<compile_context>
chip_gen: v6e
topology: v6e:2x2x1
jax: 0.10.0
libtpu: 0.0.40
codegen_flags: <defaults>
</compile_context>

<pallas_src>
import math

import jax
import jax.numpy as jnp
from jax.experimental import pallas as pl
from jax.experimental.pallas import tpu as pltpu

# ---- synthetic mini-BERT configuration (small logical shapes) ----------------
B = 2            # batch
L = 8            # sequence length (<= max_length=128)
H = 32           # logical hidden size
FFN = 64         # logical feed-forward intermediate size
N_LAYERS = 2
VOCAB = 100
MAX_LENGTH = 128
MAX_LENGTH_EMBED = 5    # matches self.max_length_embed in the module

# lane-dense padded sizes used inside the kernel
HP = 128         # hidden padded to a full lane width
FP = 128         # FFN padded to a full lane width
BL = B * L       # rows folded into the sublane dim for all dense matmuls

NEG_INF = -1e9

# packed per-layer vector table: (N_VEC_ROWS, 3*HP) f32
#   row 0: [bq_scaled | bk | bv]   (contiguous, one broadcast add)
#   row 1: bo (lanes :HP)    row 2: ln1 gamma   row 3: ln1 beta
#   row 4: b1 (lanes :FP)    row 5: b2          row 6: ln2 gamma   row 7: ln2 beta
N_VEC_ROWS = 8
VEC_W = 3 * HP
R_BQKV, R_BO, R_LN1G, R_LN1B, R_B1, R_B2, R_LN2G, R_LN2B = range(8)


# ---- fused all-layers transformer kernel -------------------------------------
def _layernorm(x, gamma, beta, eps=1e-12):
    # E[x^2] - mu^2 formulation: two independent reductions, no hmask pass.
    # Padded lanes of x are exactly zero; gamma/beta are zero on padded lanes,
    # so the output stays exactly zero there (invariant asserted in init_params).
    s1 = jnp.sum(x, axis=-1, keepdims=True)
    s2 = jnp.sum(x * x, axis=-1, keepdims=True)
    mu = s1 * (1.0 / H)
    var = s2 * (1.0 / H) - mu * mu
    return (x - mu) * jax.lax.rsqrt(var + eps) * gamma + beta


def fused_bert_kernel(rows_ref,                       # SMEM scalar prefetch: (2B,) flat gather rows
                      x_ref, bias_ref,                # (BL,HP) f32, (BL,BL) f32
                      wqkv_ref, wo_ref, w1_ref, w2_ref, vec_ref,   # stacked per-layer weights
                      out_ref,                        # (2B, HP) f32
                      xs_ref):                        # VMEM scratch (BL, HP) f32
    x = x_ref[...]                 # (BL, HP) f32, padded lanes are zero
    bias = bias_ref[...]           # (BL, BL) additive mask (0 or -1e9), hoisted

    for l in range(N_LAYERS):      # statically unrolled layer loop (no grid steps)
        V = vec_ref[l]             # (N_VEC_ROWS, 3*HP) f32 bias / LayerNorm table

        # ---- self-attention (single head, d_head = H), flattened over batch ----
        xb = x.astype(jnp.bfloat16)
        qkv = (jnp.dot(xb, wqkv_ref[l], preferred_element_type=jnp.float32)
               + V[R_BQKV:R_BQKV + 1, :])                          # (BL, 3*HP), one bias add
        q = qkv[:, 0 * HP:1 * HP].astype(jnp.bfloat16)             # scale already folded into Wq/bq
        k = qkv[:, 1 * HP:2 * HP].astype(jnp.bfloat16)
        v = qkv[:, 2 * HP:3 * HP].astype(jnp.bfloat16)

        # one (BL,HP)x(HP,BL) matmul; contraction on the last dim of both operands
        scores = jax.lax.dot_general(q, k, (((1,), (1,)), ((), ())),
                                     preferred_element_type=jnp.float32)   # (BL, BL)
        scores = scores + bias
        # no row-max subtraction: scores are bounded (0.02-scale weights) and
        # masked / cross-batch keys carry -1e9 which exp()s to exactly 0.
        p = jnp.exp(scores)
        p = p * pl.reciprocal(jnp.sum(p, axis=-1, keepdims=True), approx=True)

        ctx = jnp.dot(p.astype(jnp.bfloat16), v,
                      preferred_element_type=jnp.float32)          # (BL, HP)
        attn = (jnp.dot(ctx.astype(jnp.bfloat16), wo_ref[l],
                        preferred_element_type=jnp.float32)
                + V[R_BO:R_BO + 1, :HP])
        h1 = _layernorm(x + attn, V[R_LN1G:R_LN1G + 1, :HP], V[R_LN1B:R_LN1B + 1, :HP])

        # ---- feed-forward ----
        ff = (jnp.dot(h1.astype(jnp.bfloat16), w1_ref[l],
                      preferred_element_type=jnp.float32)
              + V[R_B1:R_B1 + 1, :FP])
        # NOTE: HF/PyTorch BERT uses the exact erf GELU; the tanh approximation
        # is used here (EUP tanh path, ~1e-3 delta) — switch to
        # jax.nn.gelu(ff, approximate=False) if exact parity is required.
        ff = jax.nn.gelu(ff, approximate=True)
        ffo = (jnp.dot(ff.astype(jnp.bfloat16), w2_ref[l],
                       preferred_element_type=jnp.float32)
               + V[R_B2:R_B2 + 1, :HP])
        x = _layernorm(h1 + ffo, V[R_LN2G:R_LN2G + 1, :HP], V[R_LN2B:R_LN2B + 1, :HP])

    # ---- fused entity-start gather epilogue: store only the 2*B needed rows ----
    xs_ref[...] = x
    for r in range(2 * B):
        row = rows_ref[r]                                   # SMEM scalar read
        out_ref[pl.ds(r, 1), :] = xs_ref[pl.ds(row, 1), :]  # dynamic sublane gather


def fused_bert_encoder(gather_rows, x0, attn_bias, w_qkv, w_o, w_1, w_2, vecs):
    # advisory cost estimate (all layers)
    matmul_flops = N_LAYERS * (2 * BL * HP * (3 * HP)      # qkv
                               + 2 * 2 * BL * BL * HP      # scores + ctx
                               + 2 * BL * HP * HP          # output proj
                               + 2 * BL * HP * FP          # ffn up
                               + 2 * BL * FP * HP)         # ffn down
    transcendentals = N_LAYERS * (BL * BL + BL * FP + 3 * BL)
    bytes_accessed = ((w_qkv.size + w_o.size + w_1.size + w_2.size) * 2   # bf16
                      + vecs.size * 4 + x0.size * 4 + attn_bias.size * 4
                      + 2 * B * HP * 4 + gather_rows.size * 4)

    return pl.pallas_call(
        fused_bert_kernel,
        out_shape=jax.ShapeDtypeStruct((2 * B, HP), jnp.float32),
        grid_spec=pltpu.PrefetchScalarGridSpec(
            num_scalar_prefetch=1,                     # gather_rows -> SMEM
            grid=(1,),                                 # single kernel invocation
            in_specs=[
                pl.BlockSpec((BL, HP), lambda i, rows: (0, 0)),                 # x0
                pl.BlockSpec((BL, BL), lambda i, rows: (0, 0)),                 # additive attn bias
                pl.BlockSpec((N_LAYERS, HP, 3 * HP), lambda i, rows: (0, 0, 0)),  # packed Wqkv stack
                pl.BlockSpec((N_LAYERS, HP, HP), lambda i, rows: (0, 0, 0)),      # Wo stack
                pl.BlockSpec((N_LAYERS, HP, FP), lambda i, rows: (0, 0, 0)),      # W1 stack
                pl.BlockSpec((N_LAYERS, FP, HP), lambda i, rows: (0, 0, 0)),      # W2 stack
                pl.BlockSpec((N_LAYERS, N_VEC_ROWS, VEC_W), lambda i, rows: (0, 0, 0)),  # biases/LN
            ],
            out_specs=pl.BlockSpec((2 * B, HP), lambda i, rows: (0, 0)),
            scratch_shapes=[pltpu.VMEM((BL, HP), jnp.float32)],   # final activation for gather
        ),
        compiler_params=pltpu.CompilerParams(
            dimension_semantics=("arbitrary",),
            vmem_limit_bytes=32 * 1024 * 1024,   # ~0.5 MiB actually resident; ample headroom
        ),
        cost_estimate=pl.CostEstimate(
            flops=int(matmul_flops),
            transcendentals=int(transcendentals),
            bytes_accessed=int(bytes_accessed)),
    )(gather_rows, x0, attn_bias, w_qkv, w_o, w_1, w_2, vecs)


# ---- deterministic parameter construction ------------------------------------
def _pad2(w, rows, cols):
    return jnp.pad(w, ((0, rows - w.shape[0]), (0, cols - w.shape[1])))


def init_params(key):
    keys = iter(jax.random.split(key, 64))

    def dense(shape, scale=0.02):
        return (scale * jax.random.normal(next(keys), shape)).astype(jnp.float32)

    params = {
        # BERT-style embedding tables (real logical H)
        "word_emb": dense((VOCAB, H)),
        "pos_emb": dense((MAX_LENGTH, H)),
        "type_emb": dense((2, H)),
        "emb_ln_g": jnp.ones((H,), jnp.float32),
        "emb_ln_b": jnp.zeros((H,), jnp.float32),
        # auxiliary embeddings declared in __init__ (unused: flags default False)
        "position_embed": dense((MAX_LENGTH, MAX_LENGTH_EMBED)),
        "pos_tags_embed": dense((8, MAX_LENGTH_EMBED)),
        "deps_tags_embed": dense((8, MAX_LENGTH_EMBED)),
    }

    inv_sqrt_h = 1.0 / math.sqrt(H)
    w_qkv, w_o, w_1, w_2, vecs = [], [], [], [], []
    for _ in range(N_LAYERS):
        wq, wk, wv, wo = dense((H, H)), dense((H, H)), dense((H, H)), dense((H, H))
        w1, w2 = dense((H, FFN)), dense((FFN, H))
        bq = jnp.zeros((H,), jnp.float32)
        bk = jnp.zeros((H,), jnp.float32)
        bv = jnp.zeros((H,), jnp.float32)

        # fold the 1/sqrt(d_head) attention scale into Wq / bq at packing time
        w_qkv.append(jnp.concatenate(
            [_pad2(wq * inv_sqrt_h, HP, HP), _pad2(wk, HP, HP), _pad2(wv, HP, HP)], axis=1))
        w_o.append(_pad2(wo, HP, HP))
        w_1.append(_pad2(w1, HP, FP))
        w_2.append(_pad2(w2, FP, HP))

        rows = jnp.zeros((N_VEC_ROWS, VEC_W), jnp.float32)
        rows = rows.at[R_BQKV, 0 * HP:0 * HP + H].set(bq * inv_sqrt_h)
        rows = rows.at[R_BQKV, 1 * HP:1 * HP + H].set(bk)
        rows = rows.at[R_BQKV, 2 * HP:2 * HP + H].set(bv)
        # biases bo/b1/b2 are zero at init; LN gammas are 1 on real lanes, 0 on padding
        rows = rows.at[R_LN1G, :H].set(1.0)
        rows = rows.at[R_LN2G, :H].set(1.0)
        vecs.append(rows)

    params["w_qkv"] = jnp.stack(w_qkv).astype(jnp.bfloat16)
    params["w_o"] = jnp.stack(w_o).astype(jnp.bfloat16)
    params["w_1"] = jnp.stack(w_1).astype(jnp.bfloat16)
    params["w_2"] = jnp.stack(w_2).astype(jnp.bfloat16)
    params["vecs"] = jnp.stack(vecs)

    # Invariant required by the in-kernel LayerNorm: padded hidden lanes of the
    # LN gamma/beta rows must be exactly zero (any nonzero value there would
    # silently corrupt the LN statistics / residual stream).
    ln_pad = params["vecs"][:, (R_LN1G, R_LN1B, R_LN2G, R_LN2B), H:HP]
    assert float(jnp.max(jnp.abs(ln_pad))) == 0.0, "padded LN lanes must stay zero"
    return params


# ---- forward: BERT encode + gather entity-start hidden states -> (B, 2H) -----
def base_bert_encoder_forward(params, token, att_mask, pos1, pos2,
                              sk_pos1=None, sk_pos2=None,
                              pos_tag1=None, pos_tag2=None,
                              deps1=None, deps2=None):
    # Embedding lookup + embedding LayerNorm (glue, plain JAX at real H).
    emb = (params["word_emb"][token]
           + params["pos_emb"][jnp.arange(L)][None, :, :]
           + params["type_emb"][0][None, None, :])
    mu = jnp.mean(emb, axis=-1, keepdims=True)
    var = jnp.mean((emb - mu) ** 2, axis=-1, keepdims=True)
    x0 = ((emb - mu) * jax.lax.rsqrt(var + 1e-12)
          * params["emb_ln_g"] + params["emb_ln_b"])
    # Dropout (self.drop) is identity at inference time.

    # lane-dense, zero-padded activation: (B*L, HP)
    x0p = jnp.pad(x0, ((0, 0), (0, 0), (0, HP - H))).reshape(BL, HP).astype(jnp.float32)

    # precomputed additive attention bias for flattened (BL,BL) attention:
    # block-diagonal across batch + key padding; -1e9 on disallowed keys.
    batch_id = jnp.arange(BL, dtype=jnp.int32) // L
    same_batch = batch_id[:, None] == batch_id[None, :]
    key_valid = (att_mask.reshape(BL) > 0)[None, :]
    attn_bias = jnp.where(same_batch & key_valid, 0.0, NEG_INF).astype(jnp.float32)

    # flat row indices of head/tail entity starters, gathered inside the kernel
    base = jnp.arange(B, dtype=jnp.int32) * L
    gather_rows = jnp.concatenate([
        base + pos1.reshape(B).astype(jnp.int32),
        base + pos2.reshape(B).astype(jnp.int32)]).astype(jnp.int32)   # (2B,)

    y = fused_bert_encoder(gather_rows, x0p, attn_bias,
                           params["w_qkv"], params["w_o"],
                           params["w_1"], params["w_2"], params["vecs"])   # (2B, HP)

    head_h = y[:B, :H]    # hidden state at head-entity start (pos1)
    tail_h = y[B:, :H]    # hidden state at tail-entity start (pos2)
    # TODO(synk): sk_pos/pos_tag/deps auxiliary embeddings are declared in
    # __init__ but unused in the base forward (all flags default to False).
    return jnp.concatenate([head_h, tail_h], axis=-1)                 # (B, 2H)


if __name__ == "__main__":
    key = jax.random.PRNGKey(0)
    params = init_params(key)

    k_tok, k_p1, k_p2 = jax.random.split(jax.random.PRNGKey(1), 3)
    token = jax.random.randint(k_tok, (B, L), 1, VOCAB, dtype=jnp.int32)
    att_mask = jnp.array([[1, 1, 1, 1, 1, 1, 1, 1],
                          [1, 1, 1, 1, 1, 0, 0, 0]], dtype=jnp.int32)
    pos1 = jnp.array([[1], [2]], dtype=jnp.int32)
    pos2 = jnp.array([[4], [3]], dtype=jnp.int32)

    out = base_bert_encoder_forward(params, token, att_mask, pos1, pos2)
    out = jax.block_until_ready(out)
    assert out.shape == (B, 2 * H), out.shape
    assert bool(jnp.all(jnp.isfinite(out)))
    print("KERNEL_OK")
</pallas_src>

<mosaic_0001>
module attributes {stable_mosaic.version = 11 : i64} {
  func.func @fused_bert_kernel(%arg0: i32, %arg1: memref<4xi32, #tpu.memory_space<smem>>, %arg2: memref<16x128xf32, #tpu.memory_space<vmem>>, %arg3: memref<16x16xf32, #tpu.memory_space<vmem>>, %arg4: memref<2x128x384xbf16, #tpu.memory_space<vmem>>, %arg5: memref<2x128x128xbf16, #tpu.memory_space<vmem>>, %arg6: memref<2x128x128xbf16, #tpu.memory_space<vmem>>, %arg7: memref<2x128x128xbf16, #tpu.memory_space<vmem>>, %arg8: memref<2x8x384xf32, #tpu.memory_space<vmem>>, %arg9: memref<4x128xf32, #tpu.memory_space<vmem>>, %arg10: memref<16x128xf32, #tpu.memory_space<vmem>>) attributes {dimension_semantics = [#tpu.dimension_semantics<arbitrary>], iteration_bounds = array<i64: 1>, scalar_prefetch = 1 : i64, scratch_operands = 1 : i64, tpu.core_type = #tpu.core_type<tc>, window_params = [{pipeline_mode = #tpu.pipeline_mode<synchronous>, transform_indices = @transform_0, window_bounds = array<i64: 16, 128>}, {pipeline_mode = #tpu.pipeline_mode<synchronous>, transform_indices = @transform_1, window_bounds = array<i64: 16, 16>}, {pipeline_mode = #tpu.pipeline_mode<synchronous>, transform_indices = @transform_2, window_bounds = array<i64: 2, 128, 384>}, {pipeline_mode = #tpu.pipeline_mode<synchronous>, transform_indices = @transform_3, window_bounds = array<i64: 2, 128, 128>}, {pipeline_mode = #tpu.pipeline_mode<synchronous>, transform_indices = @transform_4, window_bounds = array<i64: 2, 128, 128>}, {pipeline_mode = #tpu.pipeline_mode<synchronous>, transform_indices = @transform_5, window_bounds = array<i64: 2, 128, 128>}, {pipeline_mode = #tpu.pipeline_mode<synchronous>, transform_indices = @transform_6, window_bounds = array<i64: 2, 8, 384>}, {pipeline_mode = #tpu.pipeline_mode<synchronous>, transform_indices = @transform_7, window_bounds = array<i64: 4, 128>}]} {
    %c0 = arith.constant 0 : index
    %c0_0 = arith.constant 0 : index
    %0 = vector.load %arg2[%c0, %c0_0] : memref<16x128xf32, #tpu.memory_space<vmem>>, vector<16x128xf32>
    %c0_1 = arith.constant 0 : index
    %c0_2 = arith.constant 0 : index
    %1 = vector.load %arg3[%c0_1, %c0_2] : memref<16x16xf32, #tpu.memory_space<vmem>>, vector<16x16xf32>
    %c0_3 = arith.constant 0 : index
    %c0_4 = arith.constant 0 : index
    %c0_5 = arith.constant 0 : index
    %2 = vector.load %arg8[%c0_3, %c0_4, %c0_5] : memref<2x8x384xf32, #tpu.memory_space<vmem>>, vector<1x8x384xf32>
    %3 = vector.shape_cast %2 : vector<1x8x384xf32> to vector<8x384xf32>
    %4 = arith.truncf %0 : vector<16x128xf32> to vector<16x128xbf16>
    %c0_6 = arith.constant 0 : index
    %c0_7 = arith.constant 0 : index
    %c0_8 = arith.constant 0 : index
    %5 = vector.load %arg4[%c0_6, %c0_7, %c0_8] : memref<2x128x384xbf16, #tpu.memory_space<vmem>>, vector<1x128x384xbf16>
    %6 = vector.shape_cast %5 : vector<1x128x384xbf16> to vector<128x384xbf16>
    %cst = arith.constant dense<0.000000e+00> : vector<16x384xf32>
    %7 = tpu.matmul %4, %6, %cst {dimension_numbers = #tpu.dot_dimension_numbers<[1], [0], [0], [1], [0, 0, 1, 1], [], []>} : vector<16x128xbf16>, vector<128x384xbf16>, vector<16x384xf32> -> vector<16x384xf32>
    %8 = vector.extract_strided_slice %3 {offsets = [0, 0], sizes = [1, 384], strides = [1, 1]} : vector<8x384xf32> to vector<1x384xf32>
    %9 = vector.broadcast %8 : vector<1x384xf32> to vector<16x384xf32>
    %10 = arith.addf %7, %9 : vector<16x384xf32>
    %11 = vector.extract_strided_slice %10 {offsets = [0, 0], sizes = [16, 128], strides = [1, 1]} : vector<16x384xf32> to vector<16x128xf32>
    %12 = arith.truncf %11 : vector<16x128xf32> to vector<16x128xbf16>
    %13 = vector.extract_strided_slice %10 {offsets = [0, 128], sizes = [16, 128], strides = [1, 1]} : vector<16x384xf32> to vector<16x128xf32>
    %14 = arith.truncf %13 : vector<16x128xf32> to vector<16x128xbf16>
    %15 = vector.extract_strided_slice %10 {offsets = [0, 256], sizes = [16, 128], strides = [1, 1]} : vector<16x384xf32> to vector<16x128xf32>
    %16 = arith.truncf %15 : vector<16x128xf32> to vector<16x128xbf16>
    %cst_9 = arith.constant dense<0.000000e+00> : vector<16x16xf32>
    %17 = tpu.matmul %12, %14, %cst_9 {dimension_numbers = #tpu.dot_dimension_numbers<[1], [1], [0], [0], [0, 0, 1, 0], [], []>} : vector<16x128xbf16>, vector<16x128xbf16>, vector<16x16xf32> -> vector<16x16xf32>
    %18 = arith.addf %17, %1 : vector<16x16xf32>
    %19 = math.exp %18 : vector<16x16xf32>
    %cst_10 = arith.constant dense<0.000000e+00> : vector<16xf32>
    %20 = vector.multi_reduction <add>, %19, %cst_10 [1] : vector<16x16xf32> to vector<16xf32>
    %21 = vector.shape_cast %20 : vector<16xf32> to vector<16x1xf32>
    %22 = tpu.reciprocal %21 {approx = true} : vector<16x1xf32> -> vector<16x1xf32>
    %23 = vector.broadcast %22 : vector<16x1xf32> to vector<16x16xf32>
    %24 = arith.mulf %19, %23 : vector<16x16xf32>
    %25 = arith.truncf %24 : vector<16x16xf32> to vector<16x16xbf16>
    %cst_11 = arith.constant dense<0.000000e+00> : vector<16x128xf32>
    %26 = tpu.matmul %25, %16, %cst_11 {dimension_numbers = #tpu.dot_dimension_numbers<[1], [0], [0], [1], [0, 0, 1, 1], [], []>} : vector<16x16xbf16>, vector<16x128xbf16>, vector<16x128xf32> -> vector<16x128xf32>
    %27 = arith.truncf %26 : vector<16x128xf32> to vector<16x128xbf16>
    %c0_12 = arith.constant 0 : index
    %c0_13 = arith.constant 0 : index
    %c0_14 = arith.constant 0 : index
    %28 = vector.load %arg5[%c0_12, %c0_13, %c0_14] : memref<2x128x128xbf16, #tpu.memory_space<vmem>>, vector<1x128x128xbf16>
    %29 = vector.shape_cast %28 : vector<1x128x128xbf16> to vector<128x128xbf16>
    %cst_15 = arith.constant dense<0.000000e+00> : vector<16x128xf32>
    %30 = tpu.matmul %27, %29, %cst_15 {dimension_numbers = #tpu.dot_dimension_numbers<[1], [0], [0], [1], [0, 0, 1, 1], [], []>} : vector<16x128xbf16>, vector<128x128xbf16>, vector<16x128xf32> -> vector<16x128xf32>
    %31 = vector.extract_strided_slice %3 {offsets = [1, 0], sizes = [1, 128], strides = [1, 1]} : vector<8x384xf32> to vector<1x128xf32>
    %32 = vector.broadcast %31 : vector<1x128xf32> to vector<16x128xf32>
    %33 = arith.addf %30, %32 : vector<16x128xf32>
    %34 = arith.addf %0, %33 : vector<16x128xf32>
    %35 = vector.extract_strided_slice %3 {offsets = [2, 0], sizes = [1, 128], strides = [1, 1]} : vector<8x384xf32> to vector<1x128xf32>
    %36 = vector.extract_strided_slice %3 {offsets = [3, 0], sizes = [1, 128], strides = [1, 1]} : vector<8x384xf32> to vector<1x128xf32>
    %cst_16 = arith.constant dense<0.000000e+00> : vector<16xf32>
    %37 = vector.multi_reduction <add>, %34, %cst_16 [1] : vector<16x128xf32> to vector<16xf32>
    %38 = vector.shape_cast %37 : vector<16xf32> to vector<16x1xf32>
    %39 = arith.mulf %34, %34 : vector<16x128xf32>
    %cst_17 = arith.constant dense<0.000000e+00> : vector<16xf32>
    %40 = vector.multi_reduction <add>, %39, %cst_17 [1] : vector<16x128xf32> to vector<16xf32>
    %41 = vector.shape_cast %40 : vector<16xf32> to vector<16x1xf32>
    %cst_18 = arith.constant 3.125000e-02 : f32
    %42 = vector.broadcast %cst_18 : f32 to vector<16x1xf32>
    %43 = arith.mulf %38, %42 : vector<16x1xf32>
    %cst_19 = arith.constant 3.125000e-02 : f32
    %44 = vector.broadcast %cst_19 : f32 to vector<16x1xf32>
    %45 = arith.mulf %41, %44 : vector<16x1xf32>
    %46 = arith.mulf %43, %43 : vector<16x1xf32>
    %47 = arith.subf %45, %46 : vector<16x1xf32>
    %48 = vector.broadcast %43 : vector<16x1xf32> to vector<16x128xf32>
    %49 = arith.subf %34, %48 : vector<16x128xf32>
    %cst_20 = arith.constant 9.99999996E-13 : f32
    %50 = vector.broadcast %cst_20 : f32 to vector<16x1xf32>
    %51 = arith.addf %47, %50 : vector<16x1xf32>
    %52 = math.rsqrt %51 : vector<16x1xf32>
    %53 = vector.broadcast %52 : vector<16x1xf32> to vector<16x128xf32>
    %54 = arith.mulf %49, %53 : vector<16x128xf32>
    %55 = vector.broadcast %35 : vector<1x128xf32> to vector<16x128xf32>
    %56 = arith.mulf %54, %55 : vector<16x128xf32>
    %57 = vector.broadcast %36 : vector<1x128xf32> to vector<16x128xf32>
    %58 = arith.addf %56, %57 : vector<16x128xf32>
    %59 = arith.truncf %58 : vector<16x128xf32> to vector<16x128xbf16>
    %c0_21 = arith.constant 0 : index
    %c0_22 = arith.constant 0 : index
    %c0_23 = arith.constant 0 : index
    %60 = vector.load %arg6[%c0_21, %c0_22, %c0_23] : memref<2x128x128xbf16, #tpu.memory_space<vmem>>, vector<1x128x128xbf16>
    %61 = vector.shape_cast %60 : vector<1x128x128xbf16> to vector<128x128xbf16>
    %cst_24 = arith.constant dense<0.000000e+00> : vector<16x128xf32>
    %62 = tpu.matmul %59, %61, %cst_24 {dimension_numbers = #tpu.dot_dimension_numbers<[1], [0], [0], [1], [0, 0, 1, 1], [], []>} : vector<16x128xbf16>, vector<128x128xbf16>, vector<16x128xf32> -> vector<16x128xf32>
    %63 = vector.extract_strided_slice %3 {offsets = [4, 0], sizes = [1, 128], strides = [1, 1]} : vector<8x384xf32> to vector<1x128xf32>
    %64 = vector.broadcast %63 : vector<1x128xf32> to vector<16x128xf32>
    %65 = arith.addf %62, %64 : vector<16x128xf32>
    %66 = arith.mulf %65, %65 : vector<16x128xf32>
    %67 = arith.mulf %65, %66 : vector<16x128xf32>
    %cst_25 = arith.constant 4.471500e-02 : f32
    %68 = vector.broadcast %cst_25 : f32 to vector<16x128xf32>
    %69 = arith.mulf %68, %67 : vector<16x128xf32>
    %70 = arith.addf %65, %69 : vector<16x128xf32>
    %cst_26 = arith.constant 0.797884583 : f32
    %71 = vector.broadcast %cst_26 : f32 to vector<16x128xf32>
    %72 = arith.mulf %71, %70 : vector<16x128xf32>
    %73 = math.tanh %72 : vector<16x128xf32>
    %cst_27 = arith.constant 1.000000e+00 : f32
    %74 = vector.broadcast %cst_27 : f32 to vector<16x128xf32>
    %75 = arith.addf %74, %73 : vector<16x128xf32>
    %cst_28 = arith.constant 5.000000e-01 : f32
    %76 = vector.broadcast %cst_28 : f32 to vector<16x128xf32>
    %77 = arith.mulf %76, %75 : vector<16x128xf32>
    %78 = arith.mulf %65, %77 : vector<16x128xf32>
    %79 = arith.truncf %78 : vector<16x128xf32> to vector<16x128xbf16>
    %c0_29 = arith.constant 0 : index
    %c0_30 = arith.constant 0 : index
    %c0_31 = arith.constant 0 : index
    %80 = vector.load %arg7[%c0_29, %c0_30, %c0_31] : memref<2x128x128xbf16, #tpu.memory_space<vmem>>, vector<1x128x128xbf16>
    %81 = vector.shape_cast %80 : vector<1x128x128xbf16> to vector<128x128xbf16>
    %cst_32 = arith.constant dense<0.000000e+00> : vector<16x128xf32>
    %82 = tpu.matmul %79, %81, %cst_32 {dimension_numbers = #tpu.dot_dimension_numbers<[1], [0], [0], [1], [0, 0, 1, 1], [], []>} : vector<16x128xbf16>, vector<128x128xbf16>, vector<16x128xf32> -> vector<16x128xf32>
    %83 = vector.extract_strided_slice %3 {offsets = [5, 0], sizes = [1, 128], strides = [1, 1]} : vector<8x384xf32> to vector<1x128xf32>
    %84 = vector.broadcast %83 : vector<1x128xf32> to vector<16x128xf32>
    %85 = arith.addf %82, %84 : vector<16x128xf32>
    %86 = arith.addf %58, %85 : vector<16x128xf32>
    %87 = vector.extract_strided_slice %3 {offsets = [6, 0], sizes = [1, 128], strides = [1, 1]} : vector<8x384xf32> to vector<1x128xf32>
    %88 = vector.extract_strided_slice %3 {offsets = [7, 0], sizes = [1, 128], strides = [1, 1]} : vector<8x384xf32> to vector<1x128xf32>
    %cst_33 = arith.constant dense<0.000000e+00> : vector<16xf32>
    %89 = vector.multi_reduction <add>, %86, %cst_33 [1] : vector<16x128xf32> to vector<16xf32>
    %90 = vector.shape_cast %89 : vector<16xf32> to vector<16x1xf32>
    %91 = arith.mulf %86, %86 : vector<16x128xf32>
    %cst_34 = arith.constant dense<0.000000e+00> : vector<16xf32>
    %92 = vector.multi_reduction <add>, %91, %cst_34 [1] : vector<16x128xf32> to vector<16xf32>
    %93 = vector.shape_cast %92 : vector<16xf32> to vector<16x1xf32>
    %cst_35 = arith.constant 3.125000e-02 : f32
    %94 = vector.broadcast %cst_35 : f32 to vector<16x1xf32>
    %95 = arith.mulf %90, %94 : vector<16x1xf32>
    %cst_36 = arith.constant 3.125000e-02 : f32
    %96 = vector.broadcast %cst_36 : f32 to vector<16x1xf32>
    %97 = arith.mulf %93, %96 : vector<16x1xf32>
    %98 = arith.mulf %95, %95 : vector<16x1xf32>
    %99 = arith.subf %97, %98 : vector<16x1xf32>
    %100 = vector.broadcast %95 : vector<16x1xf32> to vector<16x128xf32>
    %101 = arith.subf %86, %100 : vector<16x128xf32>
    %cst_37 = arith.constant 9.99999996E-13 : f32
    %102 = vector.broadcast %cst_37 : f32 to vector<16x1xf32>
    %103 = arith.addf %99, %102 : vector<16x1xf32>
    %104 = math.rsqrt %103 : vector<16x1xf32>
    %105 = vector.broadcast %104 : vector<16x1xf32> to vector<16x128xf32>
    %106 = arith.mulf %101, %105 : vector<16x128xf32>
    %107 = vector.broadcast %87 : vector<1x128xf32> to vector<16x128xf32>
    %108 = arith.mulf %106, %107 : vector<16x128xf32>
    %109 = vector.broadcast %88 : vector<1x128xf32> to vector<16x128xf32>
    %110 = arith.addf %108, %109 : vector<16x128xf32>
    %c1 = arith.constant 1 : index
    %c0_38 = arith.constant 0 : index
    %c0_39 = arith.constant 0 : index
    %111 = vector.load %arg8[%c1, %c0_38, %c0_39] : memref<2x8x384xf32, #tpu.memory_space<vmem>>, vector<1x8x384xf32>
    %112 = vector.shape_cast %111 : vector<1x8x384xf32> to vector<8x384xf32>
    %113 = arith.truncf %110 : vector<16x128xf32> to vector<16x128xbf16>
    %c1_40 = arith.constant 1 : index
    %c0_41 = arith.constant 0 : index
    %c0_42 = arith.constant 0 : index
    %114 = vector.load %arg4[%c1_40, %c0_41, %c0_42] : memref<2x128x384xbf16, #tpu.memory_space<vmem>>, vector<1x128x384xbf16>
    %115 = vector.shape_cast %114 : vector<1x128x384xbf16> to vector<128x384xbf16>
    %cst_43 = arith.constant dense<0.000000e+00> : vector<16x384xf32>
    %116 = tpu.matmul %113, %115, %cst_43 {dimension_numbers = #tpu.dot_dimension_numbers<[1], [0], [0], [1], [0, 0, 1, 1], [], []>} : vector<16x128xbf16>, vector<128x384xbf16>, vector<16x384xf32> -> vector<16x384xf32>
    %117 = vector.extract_strided_slice %112 {offsets = [0, 0], sizes = [1, 384], strides = [1, 1]} : vector<8x384xf32> to vector<1x384xf32>
    %118 = vector.broadcast %117 : vector<1x384xf32> to vector<16x384xf32>
    %119 = arith.addf %116, %118 : vector<16x384xf32>
    %120 = vector.extract_strided_slice %119 {offsets = [0, 0], sizes = [16, 128], strides = [1, 1]} : vector<16x384xf32> to vector<16x128xf32>
    %121 = arith.truncf %120 : vector<16x128xf32> to vector<16x128xbf16>
    %122 = vector.extract_strided_slice %119 {offsets = [0, 128], sizes = [16, 128], strides = [1, 1]} : vector<16x384xf32> to vector<16x128xf32>
    %123 = arith.truncf %122 : vector<16x128xf32> to vector<16x128xbf16>
    %124 = vector.extract_strided_slice %119 {offsets = [0, 256], sizes = [16, 128], strides = [1, 1]} : vector<16x384xf32> to vector<16x128xf32>
    %125 = arith.truncf %124 : vector<16x128xf32> to vector<16x128xbf16>
    %cst_44 = arith.constant dense<0.000000e+00> : vector<16x16xf32>
    %126 = tpu.matmul %121, %123, %cst_44 {dimension_numbers = #tpu.dot_dimension_numbers<[1], [1], [0], [0], [0, 0, 1, 0], [], []>} : vector<16x128xbf16>, vector<16x128xbf16>, vector<16x16xf32> -> vector<16x16xf32>
    %127 = arith.addf %126, %1 : vector<16x16xf32>
    %128 = math.exp %127 : vector<16x16xf32>
    %cst_45 = arith.constant dense<0.000000e+00> : vector<16xf32>
    %129 = vector.multi_reduction <add>, %128, %cst_45 [1] : vector<16x16xf32> to vector<16xf32>
    %130 = vector.shape_cast %129 : vector<16xf32> to vector<16x1xf32>
    %131 = tpu.reciprocal %130 {approx = true} : vector<16x1xf32> -> vector<16x1xf32>
    %132 = vector.broadcast %131 : vector<16x1xf32> to vector<16x16xf32>
    %133 = arith.mulf %128, %132 : vector<16x16xf32>
    %134 = arith.truncf %133 : vector<16x16xf32> to vector<16x16xbf16>
    %cst_46 = arith.constant dense<0.000000e+00> : vector<16x128xf32>
    %135 = tpu.matmul %134, %125, %cst_46 {dimension_numbers = #tpu.dot_dimension_numbers<[1], [0], [0], [1], [0, 0, 1, 1], [], []>} : vector<16x16xbf16>, vector<16x128xbf16>, vector<16x128xf32> -> vector<16x128xf32>
    %136 = arith.truncf %135 : vector<16x128xf32> to vector<16x128xbf16>
    %c1_47 = arith.constant 1 : index
    %c0_48 = arith.constant 0 : index
    %c0_49 = arith.constant 0 : index
    %137 = vector.load %arg5[%c1_47, %c0_48, %c0_49] : memref<2x128x128xbf16, #tpu.memory_space<vmem>>, vector<1x128x128xbf16>
    %138 = vector.shape_cast %137 : vector<1x128x128xbf16> to vector<128x128xbf16>
    %cst_50 = arith.constant dense<0.000000e+00> : vector<16x128xf32>
    %139 = tpu.matmul %136, %138, %cst_50 {dimension_numbers = #tpu.dot_dimension_numbers<[1], [0], [0], [1], [0, 0, 1, 1], [], []>} : vector<16x128xbf16>, vector<128x128xbf16>, vector<16x128xf32> -> vector<16x128xf32>
    %140 = vector.extract_strided_slice %112 {offsets = [1, 0], sizes = [1, 128], strides = [1, 1]} : vector<8x384xf32> to vector<1x128xf32>
    %141 = vector.broadcast %140 : vector<1x128xf32> to vector<16x128xf32>
    %142 = arith.addf %139, %141 : vector<16x128xf32>
    %143 = arith.addf %110, %142 : vector<16x128xf32>
    %144 = vector.extract_strided_slice %112 {offsets = [2, 0], sizes = [1, 128], strides = [1, 1]} : vector<8x384xf32> to vector<1x128xf32>
    %145 = vector.extract_strided_slice %112 {offsets = [3, 0], sizes = [1, 128], strides = [1, 1]} : vector<8x384xf32> to vector<1x128xf32>
    %cst_51 = arith.constant dense<0.000000e+00> : vector<16xf32>
    %146 = vector.multi_reduction <add>, %143, %cst_51 [1] : vector<16x128xf32> to vector<16xf32>
    %147 = vector.shape_cast %146 : vector<16xf32> to vector<16x1xf32>
    %148 = arith.mulf %143, %143 : vector<16x128xf32>
    %cst_52 = arith.constant dense<0.000000e+00> : vector<16xf32>
    %149 = vector.multi_reduction <add>, %148, %cst_52 [1] : vector<16x128xf32> to vector<16xf32>
    %150 = vector.shape_cast %149 : vector<16xf32> to vector<16x1xf32>
    %cst_53 = arith.constant 3.125000e-02 : f32
    %151 = vector.broadcast %cst_53 : f32 to vector<16x1xf32>
    %152 = arith.mulf %147, %151 : vector<16x1xf32>
    %cst_54 = arith.constant 3.125000e-02 : f32
    %153 = vector.broadcast %cst_54 : f32 to vector<16x1xf32>
    %154 = arith.mulf %150, %153 : vector<16x1xf32>
    %155 = arith.mulf %152, %152 : vector<16x1xf32>
    %156 = arith.subf %154, %155 : vector<16x1xf32>
    %157 = vector.broadcast %152 : vector<16x1xf32> to vector<16x128xf32>
    %158 = arith.subf %143, %157 : vector<16x128xf32>
    %cst_55 = arith.constant 9.99999996E-13 : f32
    %159 = vector.broadcast %cst_55 : f32 to vector<16x1xf32>
    %160 = arith.addf %156, %159 : vector<16x1xf32>
    %161 = math.rsqrt %160 : vector<16x1xf32>
    %162 = vector.broadcast %161 : vector<16x1xf32> to vector<16x128xf32>
    %163 = arith.mulf %158, %162 : vector<16x128xf32>
    %164 = vector.broadcast %144 : vector<1x128xf32> to vector<16x128xf32>
    %165 = arith.mulf %163, %164 : vector<16x128xf32>
    %166 = vector.broadcast %145 : vector<1x128xf32> to vector<16x128xf32>
    %167 = arith.addf %165, %166 : vector<16x128xf32>
    %168 = arith.truncf %167 : vector<16x128xf32> to vector<16x128xbf16>
    %c1_56 = arith.constant 1 : index
    %c0_57 = arith.constant 0 : index
    %c0_58 = arith.constant 0 : index
    %169 = vector.load %arg6[%c1_56, %c0_57, %c0_58] : memref<2x128x128xbf16, #tpu.memory_space<vmem>>, vector<1x128x128xbf16>
    %170 = vector.shape_cast %169 : vector<1x128x128xbf16> to vector<128x128xbf16>
    %cst_59 = arith.constant dense<0.000000e+00> : vector<16x128xf32>
    %171 = tpu.matmul %168, %170, %cst_59 {dimension_numbers = #tpu.dot_dimension_numbers<[1], [0], [0], [1], [0, 0, 1, 1], [], []>} : vector<16x128xbf16>, vector<128x128xbf16>, vector<16x128xf32> -> vector<16x128xf32>
    %172 = vector.extract_strided_slice %112 {offsets = [4, 0], sizes = [1, 128], strides = [1, 1]} : vector<8x384xf32> to vector<1x128xf32>
    %173 = vector.broadcast %172 : vector<1x128xf32> to vector<16x128xf32>
    %174 = arith.addf %171, %173 : vector<16x128xf32>
    %175 = arith.mulf %174, %174 : vector<16x128xf32>
    %176 = arith.mulf %174, %175 : vector<16x128xf32>
    %cst_60 = arith.constant 4.471500e-02 : f32
    %177 = vector.broadcast %cst_60 : f32 to vector<16x128xf32>
    %178 = arith.mulf %177, %176 : vector<16x128xf32>
    %179 = arith.addf %174, %178 : vector<16x128xf32>
    %cst_61 = arith.constant 0.797884583 : f32
    %180 = vector.broadcast %cst_61 : f32 to vector<16x128xf32>
    %181 = arith.mulf %180, %179 : vector<16x128xf32>
    %182 = math.tanh %181 : vector<16x128xf32>
    %cst_62 = arith.constant 1.000000e+00 : f32
    %183 = vector.broadcast %cst_62 : f32 to vector<16x128xf32>
    %184 = arith.addf %183, %182 : vector<16x128xf32>
    %cst_63 = arith.constant 5.000000e-01 : f32
    %185 = vector.broadcast %cst_63 : f32 to vector<16x128xf32>
    %186 = arith.mulf %185, %184 : vector<16x128xf32>
    %187 = arith.mulf %174, %186 : vector<16x128xf32>
    %188 = arith.truncf %187 : vector<16x128xf32> to vector<16x128xbf16>
    %c1_64 = arith.constant 1 : index
    %c0_65 = arith.constant 0 : index
    %c0_66 = arith.constant 0 : index
    %189 = vector.load %arg7[%c1_64, %c0_65, %c0_66] : memref<2x128x128xbf16, #tpu.memory_space<vmem>>, vector<1x128x128xbf16>
    %190 = vector.shape_cast %189 : vector<1x128x128xbf16> to vector<128x128xbf16>
    %cst_67 = arith.constant dense<0.000000e+00> : vector<16x128xf32>
    %191 = tpu.matmul %188, %190, %cst_67 {dimension_numbers = #tpu.dot_dimension_numbers<[1], [0], [0], [1], [0, 0, 1, 1], [], []>} : vector<16x128xbf16>, vector<128x128xbf16>, vector<16x128xf32> -> vector<16x128xf32>
    %192 = vector.extract_strided_slice %112 {offsets = [5, 0], sizes = [1, 128], strides = [1, 1]} : vector<8x384xf32> to vector<1x128xf32>
    %193 = vector.broadcast %192 : vector<1x128xf32> to vector<16x128xf32>
    %194 = arith.addf %191, %193 : vector<16x128xf32>
    %195 = arith.addf %167, %194 : vector<16x128xf32>
    %196 = vector.extract_strided_slice %112 {offsets = [6, 0], sizes = [1, 128], strides = [1, 1]} : vector<8x384xf32> to vector<1x128xf32>
    %197 = vector.extract_strided_slice %112 {offsets = [7, 0], sizes = [1, 128], strides = [1, 1]} : vector<8x384xf32> to vector<1x128xf32>
    %cst_68 = arith.constant dense<0.000000e+00> : vector<16xf32>
    %198 = vector.multi_reduction <add>, %195, %cst_68 [1] : vector<16x128xf32> to vector<16xf32>
    %199 = vector.shape_cast %198 : vector<16xf32> to vector<16x1xf32>
    %200 = arith.mulf %195, %195 : vector<16x128xf32>
    %cst_69 = arith.constant dense<0.000000e+00> : vector<16xf32>
    %201 = vector.multi_reduction <add>, %200, %cst_69 [1] : vector<16x128xf32> to vector<16xf32>
    %202 = vector.shape_cast %201 : vector<16xf32> to vector<16x1xf32>
    %cst_70 = arith.constant 3.125000e-02 : f32
    %203 = vector.broadcast %cst_70 : f32 to vector<16x1xf32>
    %204 = arith.mulf %199, %203 : vector<16x1xf32>
    %cst_71 = arith.constant 3.125000e-02 : f32
    %205 = vector.broadcast %cst_71 : f32 to vector<16x1xf32>
    %206 = arith.mulf %202, %205 : vector<16x1xf32>
    %207 = arith.mulf %204, %204 : vector<16x1xf32>
    %208 = arith.subf %206, %207 : vector<16x1xf32>
    %209 = vector.broadcast %204 : vector<16x1xf32> to vector<16x128xf32>
    %210 = arith.subf %195, %209 : vector<16x128xf32>
    %cst_72 = arith.constant 9.99999996E-13 : f32
    %211 = vector.broadcast %cst_72 : f32 to vector<16x1xf32>
    %212 = arith.addf %208, %211 : vector<16x1xf32>
    %213 = math.rsqrt %212 : vector<16x1xf32>
    %214 = vector.broadcast %213 : vector<16x1xf32> to vector<16x128xf32>
    %215 = arith.mulf %210, %214 : vector<16x128xf32>
    %216 = vector.broadcast %196 : vector<1x128xf32> to vector<16x128xf32>
    %217 = arith.mulf %215, %216 : vector<16x128xf32>
    %218 = vector.broadcast %197 : vector<1x128xf32> to vector<16x128xf32>
    %219 = arith.addf %217, %218 : vector<16x128xf32>
    %c0_73 = arith.constant 0 : index
    %c0_74 = arith.constant 0 : index
    %220 = vector.load %arg10[%c0_73, %c0_74] : memref<16x128xf32, #tpu.memory_space<vmem>>, vector<16x128xf32>
    tpu.vector_store %arg10[%c0_73, %c0_74], %219 {strides = array<i32>} : memref<16x128xf32, #tpu.memory_space<vmem>>, vector<16x128xf32>,
    %c0_75 = arith.constant 0 : index
    %221 = memref.load %arg1[%c0_75] : memref<4xi32, #tpu.memory_space<smem>>
    %222 = arith.index_cast %221 : i32 to index
    %c0_76 = arith.constant 0 : index
    %223 = vector.load %arg10[%222, %c0_76] : memref<16x128xf32, #tpu.memory_space<vmem>>, vector<1x128xf32>
    %c0_77 = arith.constant 0 : index
    %c0_78 = arith.constant 0 : index
    %224 = vector.load %arg9[%c0_77, %c0_78] : memref<4x128xf32, #tpu.memory_space<vmem>>, vector<1x128xf32>
    tpu.vector_store %arg9[%c0_77, %c0_78], %223 {strides = array<i32>} : memref<4x128xf32, #tpu.memory_space<vmem>>, vector<1x128xf32>,
    %c1_79 = arith.constant 1 : index
    %225 = memref.load %arg1[%c1_79] : memref<4xi32, #tpu.memory_space<smem>>
    %226 = arith.index_cast %225 : i32 to index
    %c0_80 = arith.constant 0 : index
    %227 = vector.load %arg10[%226, %c0_80] : memref<16x128xf32, #tpu.memory_space<vmem>>, vector<1x128xf32>
    %c1_81 = arith.constant 1 : index
    %c0_82 = arith.constant 0 : index
    %228 = vector.load %arg9[%c1_81, %c0_82] : memref<4x128xf32, #tpu.memory_space<vmem>>, vector<1x128xf32>
    tpu.vector_store %arg9[%c1_81, %c0_82], %227 {strides = array<i32>} : memref<4x128xf32, #tpu.memory_space<vmem>>, vector<1x128xf32>,
    %c2 = arith.constant 2 : index
    %229 = memref.load %arg1[%c2] : memref<4xi32, #tpu.memory_space<smem>>
    %230 = arith.index_cast %229 : i32 to index
    %c0_83 = arith.constant 0 : index
    %231 = vector.load %arg10[%230, %c0_83] : memref<16x128xf32, #tpu.memory_space<vmem>>, vector<1x128xf32>
    %c2_84 = arith.constant 2 : index
    %c0_85 = arith.constant 0 : index
    %232 = vector.load %arg9[%c2_84, %c0_85] : memref<4x128xf32, #tpu.memory_space<vmem>>, vector<1x128xf32>
    tpu.vector_store %arg9[%c2_84, %c0_85], %231 {strides = array<i32>} : memref<4x128xf32, #tpu.memory_space<vmem>>, vector<1x128xf32>,
    %c3 = arith.constant 3 : index
    %233 = memref.load %arg1[%c3] : memref<4xi32, #tpu.memory_space<smem>>
    %234 = arith.index_cast %233 : i32 to index
    %c0_86 = arith.constant 0 : index
    %235 = vector.load %arg10[%234, %c0_86] : memref<16x128xf32, #tpu.memory_space<vmem>>, vector<1x128xf32>
    %c3_87 = arith.constant 3 : index
    %c0_88 = arith.constant 0 : index
    %236 = vector.load %arg9[%c3_87, %c0_88] : memref<4x128xf32, #tpu.memory_space<vmem>>, vector<1x128xf32>
    tpu.vector_store %arg9[%c3_87, %c0_88], %235 {strides = array<i32>} : memref<4x128xf32, #tpu.memory_space<vmem>>, vector<1x128xf32>,
    return
  }
  func.func @transform_0(%arg0: i32, %arg1: memref<4xi32, #tpu.memory_space<smem>>) -> (i32, i32) {
    %c0_i32 = arith.constant 0 : i32
    %c0_i32_0 = arith.constant 0 : i32
    %c0_i32_1 = arith.constant 0 : i32
    return %c0_i32, %c0_i32_0 : i32, i32
  }
  func.func @transform_1(%arg0: i32, %arg1: memref<4xi32, #tpu.memory_space<smem>>) -> (i32, i32) {
    %c0_i32 = arith.constant 0 : i32
    %c0_i32_0 = arith.constant 0 : i32
    %c0_i32_1 = arith.constant 0 : i32
    return %c0_i32, %c0_i32_0 : i32, i32
  }
  func.func @transform_2(%arg0: i32, %arg1: memref<4xi32, #tpu.memory_space<smem>>) -> (i32, i32, i32) {
    %c0_i32 = arith.constant 0 : i32
    %c0_i32_0 = arith.constant 0 : i32
    %c0_i32_1 = arith.constant 0 : i32
    %c0_i32_2 = arith.constant 0 : i32
    return %c0_i32, %c0_i32_0, %c0_i32_1 : i32, i32, i32
  }
  func.func @transform_3(%arg0: i32, %arg1: memref<4xi32, #tpu.memory_space<smem>>) -> (i32, i32, i32) {
    %c0_i32 = arith.constant 0 : i32
    %c0_i32_0 = arith.constant 0 : i32
    %c0_i32_1 = arith.constant 0 : i32
    %c0_i32_2 = arith.constant 0 : i32
    return %c0_i32, %c0_i32_0, %c0_i32_1 : i32, i32, i32
  }
  func.func @transform_4(%arg0: i32, %arg1: memref<4xi32, #tpu.memory_space<smem>>) -> (i32, i32, i32) {
    %c0_i32 = arith.constant 0 : i32
    %c0_i32_0 = arith.constant 0 : i32
    %c0_i32_1 = arith.constant 0 : i32
    %c0_i32_2 = arith.constant 0 : i32
    return %c0_i32, %c0_i32_0, %c0_i32_1 : i32, i32, i32
  }
  func.func @transform_5(%arg0: i32, %arg1: memref<4xi32, #tpu.memory_space<smem>>) -> (i32, i32, i32) {
    %c0_i32 = arith.constant 0 : i32
    %c0_i32_0 = arith.constant 0 : i32
    %c0_i32_1 = arith.constant 0 : i32
    %c0_i32_2 = arith.constant 0 : i32
    return %c0_i32, %c0_i32_0, %c0_i32_1 : i32, i32, i32
  }
  func.func @transform_6(%arg0: i32, %arg1: memref<4xi32, #tpu.memory_space<smem>>) -> (i32, i32, i32) {
    %c0_i32 = arith.constant 0 : i32
    %c0_i32_0 = arith.constant 0 : i32
    %c0_i32_1 = arith.constant 0 : i32
    %c0_i32_2 = arith.constant 0 : i32
    return %c0_i32, %c0_i32_0, %c0_i32_1 : i32, i32, i32
  }
  func.func @transform_7(%arg0: i32, %arg1: memref<4xi32, #tpu.memory_space<smem>>) -> (i32, i32) {
    %c0_i32 = arith.constant 0 : i32
    %c0_i32_0 = arith.constant 0 : i32
    %c0_i32_1 = arith.constant 0 : i32
    return %c0_i32, %c0_i32_0 : i32, i32
  }
}

</mosaic_0001>

<llo_original>
// kernel: tpu_custom_call.1
$region0: #{tpu_custom_call.1}
  #allocation0 [shape = 'u32[]', space=smem, size = 0x4, offset = 0x4, fixed_abs, tag = 'smem constant byte address 0x4 - core index']
  #allocation1 [shape = 'u32[144,128]{1,0:T(1,128)}', space=vmem, size = 0x12000, scoped, tag = 'internal scratch']
  #allocation2 [shape = 'f32[16,128]{1,0:T(8,128)}', space=vmem, size = 0x2000, scoped, tag = 'scratch operand']
  #allocation3 [shape = 's32[1]{0}', space=sflag, size = 0x4, scoped, tag = 'scoped memory for tpu_custom_call.1']
  #allocation4 [shape = 'u8[512]{0}', space=smem, size = 0x200, scoped, tag = 'prefetched SMEM operand 0']
  %s0 = inlined_call_operand.hbm [shape: s32[4], index: 0, kind: input, shape index: {}]
  %s1 = inlined_call_operand.hbm [shape: f32[16,128], index: 1, kind: input, shape index: {}]
  %s2 = inlined_call_operand.hbm [shape: f32[16,16], index: 2, kind: input, shape index: {}]
  %s3 = inlined_call_operand.hbm [shape: bf16[2,128,384], index: 3, kind: input, shape index: {}]
  %s4 = inlined_call_operand.hbm [shape: bf16[2,128,128], index: 4, kind: input, shape index: {}]
  %s5 = inlined_call_operand.hbm [shape: bf16[2,128,128], index: 5, kind: input, shape index: {}]
  %s6 = inlined_call_operand.hbm [shape: bf16[2,128,128], index: 6, kind: input, shape index: {}]
  %s7 = inlined_call_operand.hbm [shape: f32[2,8,384], index: 7, kind: input, shape index: {}]
  %s8 = inlined_call_operand.hbm [shape: f32[4,128], index: 8, kind: output, shape index: {}]
  %s9 = sld [smem:[#allocation0]]
  $region66: #{tpu_custom_call.1} parent=0
    _
  %s11 = ssub.s32 1, %s9
  %s12 = scalar_select 0, %s11, %s9
  %14 = dma.hbm_to_smem %s0, 16, [#allocation4], [#allocation3]
  %15 = dma.done [#allocation3], 16
  %16 = sfence
  $region1: #{tpu_custom_call.1} parent=0
    #allocation5 [shape = 'u8[8192]{0}', space=vmem, size = 0x2000, scoped, tag = 'input window, operand 1, single buffered']
    #allocation6 [shape = 's32[1]{0}', space=sflag, size = 0x4, scoped, tag = 'scoped memory for tpu_custom_call.1']
    #allocation7 [shape = 's32[1]{0}', space=sflag, size = 0x4, scoped, tag = 'scoped memory for tpu_custom_call.1']
    #allocation8 [shape = 'u8[8192]{0}', space=vmem, size = 0x2000, scoped, tag = 'input window, operand 2, single buffered']
    #allocation9 [shape = 's32[1]{0}', space=sflag, size = 0x4, scoped, tag = 'scoped memory for tpu_custom_call.1']
    #allocation10 [shape = 'u8[196608]{0}', space=vmem, size = 0x30000, scoped, tag = 'input window, operand 3, single buffered']
    #allocation11 [shape = 'u8[65536]{0}', space=vmem, size = 0x10000, scoped, tag = 'input window, operand 4, single buffered']
    #allocation12 [shape = 's32[1]{0}', space=sflag, size = 0x4, scoped, tag = 'scoped memory for tpu_custom_call.1']
    #allocation13 [shape = 'u8[65536]{0}', space=vmem, size = 0x10000, scoped, tag = 'input window, operand 5, single buffered']
    #allocation14 [shape = 'u8[65536]{0}', space=vmem, size = 0x10000, scoped, tag = 'input window, operand 6, single buffered']
    #allocation15 [shape = 's32[1]{0}', space=sflag, size = 0x4, scoped, tag = 'scoped memory for tpu_custom_call.1']
    #allocation16 [shape = 'u8[24576]{0}', space=vmem, size = 0x6000, scoped, tag = 'input window, operand 7, single buffered']
    #allocation17 [shape = 'u8[2048]{0}', space=vmem, size = 0x800, scoped, tag = 'output window, operand 0, single buffered']
    %17 = vsyncpa [#allocation6], 0
    %18 = vsyncpa [#allocation9], 0
    %19 = vsyncpa [#allocation12], 0
    %20 = vsyncpa [#allocation15], 0
    %21 = vsyncpa [#allocation7], 0
    // Predicated region
    $region2: #{tpu_custom_call.1} parent=1 // pred_check
      _
    $region3: #{tpu_custom_call.1} parent=1 // pred_check_branch
      %23 = sbr.rel (0) target = $region5
    $region4: #{tpu_custom_call.1} parent=1 // pred_region
      %s25 = ssub.s32 256, 256
      %26 = vsyncadd [#allocation6], %s25
      %s27 = sshll.u32 [#allocation5], 4
      %s28 = int_to_ptr.vmem [resolvable:$true] %s27
      %33 = dma.hbm_to_vmem [thread:$0]  %s1, 256, %s28, [#allocation6], 128, 128, 8
    $region5: #{tpu_custom_call.1} parent=1 // pred_fallthru
      _
    // Predicated region
    $region6: #{tpu_custom_call.1} parent=1 // pred_check
      _
    $region7: #{tpu_custom_call.1} parent=1 // pred_check_branch
      %35 = sbr.rel (0) target = $region9
    $region8: #{tpu_custom_call.1} parent=1 // pred_region
      %s37 = ssub.s32 256, 256
      %38 = vsyncadd [#allocation9], %s37
      %s39 = sshll.u32 [#allocation8], 4
      %s40 = int_to_ptr.vmem [resolvable:$true] %s39
      %45 = dma.hbm_to_vmem [thread:$0]  %s2, 256, %s40, [#allocation9], 128, 128, 8
    $region9: #{tpu_custom_call.1} parent=1 // pred_fallthru
      _
    // Predicated region
    $region10: #{tpu_custom_call.1} parent=1 // pred_check
      _
    $region11: #{tpu_custom_call.1} parent=1 // pred_check_branch
      %47 = sbr.rel (0) target = $region13
    $region12: #{tpu_custom_call.1} parent=1 // pred_region
      %s49 = ssub.s32 6144, 6144
      %50 = vsyncadd [#allocation9], %s49
      %s51 = sshll.u32 [#allocation10], 4
      %s52 = int_to_ptr.vmem [resolvable:$true] %s51
      %57 = dma.hbm_to_vmem [thread:$0]  %s3, 6144, %s52, [#allocation9], 192, 192, 12
    $region13: #{tpu_custom_call.1} parent=1 // pred_fallthru
      _
    // Predicated region
    $region14: #{tpu_custom_call.1} parent=1 // pred_check
      _
    $region15: #{tpu_custom_call.1} parent=1 // pred_check_branch
      %59 = sbr.rel (0) target = $region17
    $region16: #{tpu_custom_call.1} parent=1 // pred_region
      %s61 = ssub.s32 2048, 2048
      %62 = vsyncadd [#allocation12], %s61
      %s63 = sshll.u32 [#allocation11], 4
      %s64 = int_to_ptr.vmem [resolvable:$true] %s63
      %69 = dma.hbm_to_vmem [thread:$0]  %s4, 2048, %s64, [#allocation12], 64, 64, 4
    $region17: #{tpu_custom_call.1} parent=1 // pred_fallthru
      _
    // Predicated region
    $region18: #{tpu_custom_call.1} parent=1 // pred_check
      _
    $region19: #{tpu_custom_call.1} parent=1 // pred_check_branch
      %71 = sbr.rel (0) target = $region21
    $region20: #{tpu_custom_call.1} parent=1 // pred_region
      %s73 = ssub.s32 2048, 2048
      %74 = vsyncadd [#allocation12], %s73
      %s75 = sshll.u32 [#allocation13], 4
      %s76 = int_to_ptr.vmem [resolvable:$true] %s75
      %81 = dma.hbm_to_vmem [thread:$0]  %s5, 2048, %s76, [#allocation12], 64, 64, 4
    $region21: #{tpu_custom_call.1} parent=1 // pred_fallthru
      _
    // Predicated region
    $region22: #{tpu_custom_call.1} parent=1 // pred_check
      _
    $region23: #{tpu_custom_call.1} parent=1 // pred_check_branch
      %83 = sbr.rel (0) target = $region25
    $region24: #{tpu_custom_call.1} parent=1 // pred_region
      %s85 = ssub.s32 2048, 2048
      %86 = vsyncadd [#allocation15], %s85
      %s87 = sshll.u32 [#allocation14], 4
      %s88 = int_to_ptr.vmem [resolvable:$true] %s87
      %93 = dma.hbm_to_vmem [thread:$0]  %s6, 2048, %s88, [#allocation15], 64, 64, 4
    $region25: #{tpu_custom_call.1} parent=1 // pred_fallthru
      _
    // Predicated region
    $region26: #{tpu_custom_call.1} parent=1 // pred_check
      _
    $region27: #{tpu_custom_call.1} parent=1 // pred_check_branch
      %95 = sbr.rel (0) target = $region29
    $region28: #{tpu_custom_call.1} parent=1 // pred_region
      %s97 = ssub.s32 768, 768
      %98 = vsyncadd [#allocation15], %s97
      %s99 = sshll.u32 [#allocation16], 4
      %s100 = int_to_ptr.vmem [resolvable:$true] %s99
      %105 = dma.hbm_to_vmem [thread:$0]  %s7, 768, %s100, [#allocation15], 384, 384, 24
    $region29: #{tpu_custom_call.1} parent=1 // pred_fallthru
      _
    // Predicated region
    $region30: #{tpu_custom_call.1} parent=1 // pred_check
      _
    $region31: #{tpu_custom_call.1} parent=1 // pred_check_branch
      %107 = sbr.rel (0) target = $region33
    $region32: #{tpu_custom_call.1} parent=1 // pred_region
      %108 = dma.done [#allocation6], 256
    $region33: #{tpu_custom_call.1} parent=1 // pred_fallthru
      _
    // Predicated region
    $region34: #{tpu_custom_call.1} parent=1 // pred_check
      _
    $region35: #{tpu_custom_call.1} parent=1 // pred_check_branch
      %110 = sbr.rel (0) target = $region37
    $region36: #{tpu_custom_call.1} parent=1 // pred_region
      %111 = dma.done [#allocation9], 256
    $region37: #{tpu_custom_call.1} parent=1 // pred_fallthru
      _
    // Predicated region
    $region38: #{tpu_custom_call.1} parent=1 // pred_check
      _
    $region39: #{tpu_custom_call.1} parent=1 // pred_check_branch
      %113 = sbr.rel (0) target = $region41
    $region40: #{tpu_custom_call.1} parent=1 // pred_region
      %114 = dma.done [#allocation9], 6144
    $region41: #{tpu_custom_call.1} parent=1 // pred_fallthru
      _
    // Predicated region
    $region42: #{tpu_custom_call.1} parent=1 // pred_check
      _
    $region43: #{tpu_custom_call.1} parent=1 // pred_check_branch
      %116 = sbr.rel (0) target = $region45
    $region44: #{tpu_custom_call.1} parent=1 // pred_region
      %117 = dma.done [#allocation12], 2048
    $region45: #{tpu_custom_call.1} parent=1 // pred_fallthru
      _
    // Predicated region
    $region46: #{tpu_custom_call.1} parent=1 // pred_check
      _
    $region47: #{tpu_custom_call.1} parent=1 // pred_check_branch
      %119 = sbr.rel (0) target = $region49
    $region48: #{tpu_custom_call.1} parent=1 // pred_region
      %120 = dma.done [#allocation12], 2048
    $region49: #{tpu_custom_call.1} parent=1 // pred_fallthru
      _
    // Predicated region
    $region50: #{tpu_custom_call.1} parent=1 // pred_check
      _
    $region51: #{tpu_custom_call.1} parent=1 // pred_check_branch
      %122 = sbr.rel (0) target = $region53
    $region52: #{tpu_custom_call.1} parent=1 // pred_region
      %123 = dma.done [#allocation15], 2048
    $region53: #{tpu_custom_call.1} parent=1 // pred_fallthru
      _
    // Predicated region
    $region54: #{tpu_custom_call.1} parent=1 // pred_check
      _
    $region55: #{tpu_custom_call.1} parent=1 // pred_check_branch
      %125 = sbr.rel (0) target = $region57
    $region56: #{tpu_custom_call.1} parent=1 // pred_region
      %126 = dma.done [#allocation15], 768
    $region57: #{tpu_custom_call.1} parent=1 // pred_fallthru
      _
    %v128 = vld [vmem:[#allocation5] sm:$0xff]
    %v129 = vld [vmem:[#allocation5 + $0x8] sm:$0xff]
    %v130 = vld [vmem:[#allocation8] sm:$0xff]
    %v131 = vld [vmem:[#allocation8 + $0x8] sm:$0xff]
    %v132 = vld [vmem:[#allocation16] sm:$0xff]
    %v133 = vld [vmem:[#allocation16 + $0x8] sm:$0xff]
    %v134 = vld [vmem:[#allocation16 + $0x10] sm:$0xff]
    %v135 = vpack.c.bf16 %v129, %v128
    %v136 = vld [vmem:[#allocation10] sm:$0xff]
    %v137 = vld [vmem:[#allocation10 + $0x8] sm:$0xf]
    %v138 = vld [vmem:[#allocation10 + $0xc] sm:$0xff]
    %v139 = vld [vmem:[#allocation10 + $0x14] sm:$0xf]
    %v140 = vld [vmem:[#allocation10 + $0x18] sm:$0xff]
    %v141 = vld [vmem:[#allocation10 + $0x20] sm:$0xf]
    %v142 = vld [vmem:[#allocation10 + $0x24] sm:$0xff]
    %v143 = vld [vmem:[#allocation10 + $0x2c] sm:$0xf]
    %v144 = vld [vmem:[#allocation10 + $0x30] sm:$0xff]
    %v145 = vld [vmem:[#allocation10 + $0x38] sm:$0xf]
    %v146 = vld [vmem:[#allocation10 + $0x3c] sm:$0xff]
    %v147 = vld [vmem:[#allocation10 + $0x44] sm:$0xf]
    %v148 = vld [vmem:[#allocation10 + $0x48] sm:$0xff]
    %v149 = vld [vmem:[#allocation10 + $0x50] sm:$0xf]
    %v150 = vld [vmem:[#allocation10 + $0x54] sm:$0xff]
    %v151 = vld [vmem:[#allocation10 + $0x5c] sm:$0xf]
    %v152 = vld [vmem:[#allocation10 + $0x60] sm:$0xff]
    %v153 = vld [vmem:[#allocation10 + $0x68] sm:$0xf]
    %v154 = vld [vmem:[#allocation10 + $0x6c] sm:$0xff]
    %v155 = vld [vmem:[#allocation10 + $0x74] sm:$0xf]
    %v156 = vld [vmem:[#allocation10 + $0x78] sm:$0xff]
    %v157 = vld [vmem:[#allocation10 + $0x80] sm:$0xf]
    %v158 = vld [vmem:[#allocation10 + $0x84] sm:$0xff]
    %v159 = vld [vmem:[#allocation10 + $0x8c] sm:$0xf]
    %v160 = vld [vmem:[#allocation10 + $0x90] sm:$0xff]
    %v161 = vld [vmem:[#allocation10 + $0x98] sm:$0xf]
    %v162 = vld [vmem:[#allocation10 + $0x9c] sm:$0xff]
    %v163 = vld [vmem:[#allocation10 + $0xa4] sm:$0xf]
    %v164 = vld [vmem:[#allocation10 + $0xa8] sm:$0xff]
    %v165 = vld [vmem:[#allocation10 + $0xb0] sm:$0xf]
    %v166 = vld [vmem:[#allocation10 + $0xb4] sm:$0xff]
    %v167 = vld [vmem:[#allocation10 + $0xbc] sm:$0xf]
    %v168 = vlaneseq
    %v169 = vshrl.u32 %v168, 7
    %v170 = vsub.s32 0, %v169
    %v171 = vrot.slane %v132, %v170
    %v172 = vlaneseq
    %v173 = vshrl.u32 %v172, 7
    %v174 = vsub.s32 0, %v173
    %v175 = vrot.slane %v133, %v174
    %v176 = vlaneseq
    %v177 = vshrl.u32 %v176, 7
    %v178 = vsub.s32 0, %v177
    %v179 = vrot.slane %v134, %v178
    %v212 = vunpack.c.l.b16 %v136
    %v213 = vunpack.c.h.b16 %v136
    %v214 = vunpack.c.l.b16 %v137
    %v215 = vunpack.c.l.b16 %v138
    %v216 = vunpack.c.h.b16 %v138
    %v217 = vunpack.c.l.b16 %v139
    %v218 = vunpack.c.l.b16 %v140
    %v219 = vunpack.c.h.b16 %v140
    %v220 = vunpack.c.l.b16 %v141
    %v221 = vunpack.c.l.b16 %v142
    %v222 = vunpack.c.h.b16 %v142
    %v223 = vunpack.c.l.b16 %v143
    %v224 = vunpack.c.l.b16 %v144
    %v225 = vunpack.c.h.b16 %v144
    %v226 = vunpack.c.l.b16 %v145
    %v227 = vunpack.c.l.b16 %v146
    %v228 = vunpack.c.h.b16 %v146
    %v229 = vunpack.c.l.b16 %v147
    %v230 = vunpack.c.l.b16 %v148
    %v231 = vunpack.c.h.b16 %v148
    %v232 = vunpack.c.l.b16 %v149
    %v233 = vunpack.c.l.b16 %v150
    %v234 = vunpack.c.h.b16 %v150
    %v235 = vunpack.c.l.b16 %v151
    %v236 = vunpack.c.l.b16 %v152
    %v237 = vunpack.c.h.b16 %v152
    %v238 = vunpack.c.l.b16 %v153
    %v239 = vunpack.c.l.b16 %v154
    %v240 = vunpack.c.h.b16 %v154
    %v241 = vunpack.c.l.b16 %v155
    %v242 = vunpack.c.l.b16 %v156
    %v243 = vunpack.c.h.b16 %v156
    %v244 = vunpack.c.l.b16 %v157
    %v245 = vunpack.c.l.b16 %v158
    %v246 = vunpack.c.h.b16 %v158
    %v247 = vunpack.c.l.b16 %v159
    %v248 = vunpack.c.l.b16 %v160
    %v249 = vunpack.c.h.b16 %v160
    %v250 = vunpack.c.l.b16 %v161
    %v251 = vunpack.c.l.b16 %v162
    %v252 = vunpack.c.h.b16 %v162
    %v253 = vunpack.c.l.b16 %v163
    %v254 = vunpack.c.l.b16 %v164
    %v255 = vunpack.c.h.b16 %v164
    %v256 = vunpack.c.l.b16 %v165
    %v257 = vunpack.c.l.b16 %v166
    %v258 = vunpack.c.h.b16 %v166
    %v259 = vunpack.c.l.b16 %v167
    %v260 = vpack.c.b16 %v215, %v212
    %v261 = vpack.c.b16 %v216, %v213
    %v262 = vpack.c.b16 %v217, %v214
    %v263 = vpack.c.b16 %v221, %v218
    %v264 = vpack.c.b16 %v222, %v219
    %v265 = vpack.c.b16 %v223, %v220
    %v266 = vpack.c.b16 %v227, %v224
    %v267 = vpack.c.b16 %v228, %v225
    %v268 = vpack.c.b16 %v229, %v226
    %v269 = vpack.c.b16 %v233, %v230
    %v270 = vpack.c.b16 %v234, %v231
    %v271 = vpack.c.b16 %v235, %v232
    %v272 = vpack.c.b16 %v239, %v236
    %v273 = vpack.c.b16 %v240, %v237
    %v274 = vpack.c.b16 %v241, %v238
    %v275 = vpack.c.b16 %v245, %v242
    %v276 = vpack.c.b16 %v246, %v243
    %v277 = vpack.c.b16 %v247, %v244
    %v278 = vpack.c.b16 %v251, %v248
    %v279 = vpack.c.b16 %v252, %v249
    %v280 = vpack.c.b16 %v253, %v250
    %v281 = vpack.c.b16 %v257, %v254
    %v282 = vpack.c.b16 %v258, %v255
    %v283 = vpack.c.b16 %v259, %v256
    %308 = vmatprep.subr.bf16.mxu0 %v282
    %309 = vmatpush1.bf16.msra.mxu0 %v281
    %310 = vmatprep.subr.bf16.mxu0 %v279
    %311 = vmatpush1.bf16.msra.mxu0 %v278
    %312 = vmatprep.subr.bf16.mxu0 %v276
    %313 = vmatpush1.bf16.msra.mxu0 %v275
    %314 = vmatprep.subr.bf16.mxu0 %v273
    %315 = vmatpush1.bf16.msra.mxu0 %v272
    %316 = vmatprep.subr.bf16.mxu0 %v270
    %317 = vmatpush1.bf16.msra.mxu0 %v269
    %318 = vmatprep.subr.bf16.mxu0 %v267
    %319 = vmatpush1.bf16.msra.mxu0 %v266
    %320 = vmatprep.subr.bf16.mxu0 %v264
    %321 = vmatpush1.bf16.msra.mxu0 %v263
    %322 = vmatprep.subr.bf16.mxu0 %v261
    %323 = vmatpush1.bf16.msra.mxu0 %v260
    %324 = vmatprep.subr.bf16.mxu0 0
    %325 = vmatpush2.bf16.msra.mxu0 0
    %326 = vmatprep.subr.bf16.mxu0 0
    %327 = vmatpush2.bf16.msra.mxu0 0
    %328 = vmatprep.subr.bf16.mxu0 0
    %329 = vmatpush2.bf16.msra.mxu0 0
    %330 = vmatprep.subr.bf16.mxu0 0
    %331 = vmatpush2.bf16.msra.mxu0 0
    %332 = vmatprep.subr.bf16.mxu0 0
    %333 = vmatpush2.bf16.msra.mxu0 0
    %334 = vmatprep.subr.bf16.mxu0 0
    %335 = vmatpush2.bf16.msra.mxu0 0
    %336 = vmatprep.subr.bf16.mxu0 0
    %337 = vmatpush2.bf16.msra.mxu0 0
    %338 = vmatprep.subr.bf16.mxu0 0
    %339 = vmatpush2.bf16.msra.mxu0 0
    %340 = vmatprep.mubr.bf16.mxu0 0
    %341 = vmatmul.mubr.bf16.gmra.mxu0 %v135
    %v342 = vpop.f32.mrf.mxu0
    %v343 = vadd.f32 %v171, %v342
    %v344 = vpop.f32.mrf.mxu0
    %v345 = vadd.f32 %v175, %v344
    %v346 = vpop.f32.mrf.mxu0
    %v347 = vadd.f32 %v171, %v346
    %v348 = vpop.f32.mrf.mxu0
    %v349 = vadd.f32 %v175, %v348
    %350 = vdwg.mxu0
    %351 = vmatprep.subr.bf16.mxu0 0
    %352 = vmatpush1.bf16.msra.mxu0 %v283
    %353 = vmatprep.subr.bf16.mxu0 0
    %354 = vmatpush1.bf16.msra.mxu0 %v280
    %355 = vmatprep.subr.bf16.mxu0 0
    %356 = vmatpush1.bf16.msra.mxu0 %v277
    %357 = vmatprep.subr.bf16.mxu0 0
    %358 = vmatpush1.bf16.msra.mxu0 %v274
    %359 = vmatprep.subr.bf16.mxu0 0
    %360 = vmatpush1.bf16.msra.mxu0 %v271
    %361 = vmatprep.subr.bf16.mxu0 0
    %362 = vmatpush1.bf16.msra.mxu0 %v268
    %363 = vmatprep.subr.bf16.mxu0 0
    %364 = vmatpush1.bf16.msra.mxu0 %v265
    %365 = vmatprep.subr.bf16.mxu0 0
    %366 = vmatpush1.bf16.msra.mxu0 %v262
    %367 = vmatprep.subr.bf16.mxu0 0
    %368 = vmatpush2.bf16.msra.mxu0 0
    %369 = vmatprep.subr.bf16.mxu0 0
    %370 = vmatpush2.bf16.msra.mxu0 0
    %371 = vmatprep.subr.bf16.mxu0 0
    %372 = vmatpush2.bf16.msra.mxu0 0
    %373 = vmatprep.subr.bf16.mxu0 0
    %374 = vmatpush2.bf16.msra.mxu0 0
    %375 = vmatprep.subr.bf16.mxu0 0
    %376 = vmatpush2.bf16.msra.mxu0 0
    %377 = vmatprep.subr.bf16.mxu0 0
    %378 = vmatpush2.bf16.msra.mxu0 0
    %379 = vmatprep.subr.bf16.mxu0 0
    %380 = vmatpush2.bf16.msra.mxu0 0
    %381 = vmatprep.subr.bf16.mxu0 0
    %382 = vmatpush2.bf16.msra.mxu0 0
    %383 = vmatprep.mubr.bf16.mxu0 0
    %384 = vmatmul.mubr.bf16.gmra.mxu0 %v135
    %v385 = vpop.f32.mrf.mxu0
    %v386 = vadd.f32 %v179, %v385
    %v387 = vpop.f32.mrf.mxu0
    %v388 = vpop.f32.mrf.mxu0
    %v389 = vadd.f32 %v179, %v388
    %v390 = vpop.f32.mrf.mxu0
    %391 = vdwg.mxu0
    %v392 = vpack.c.bf16 %v347, %v343
    %v393 = vpack.c.bf16 %v349, %v345
    %v394 = vpack.c.bf16 %v389, %v386
    %395 = vmatprep.subr.bf16.mxu0 0
    %396 = vmatpush1.bf16.xpose.msra.mxu0 0
    %397 = vmatprep.subr.bf16.mxu0 0
    %398 = vmatpush1.bf16.xpose.msra.mxu0 0
    %399 = vmatprep.subr.bf16.mxu0 0
    %400 = vmatpush1.bf16.xpose.msra.mxu0 0
    %401 = vmatprep.subr.bf16.mxu0 0
    %402 = vmatpush1.bf16.xpose.msra.mxu0 0
    %403 = vmatprep.subr.bf16.mxu0 0
    %404 = vmatpush1.bf16.xpose.msra.mxu0 0
    %405 = vmatprep.subr.bf16.mxu0 0
    %406 = vmatpush1.bf16.xpose.msra.mxu0 0
    %407 = vmatprep.subr.bf16.mxu0 0
    %408 = vmatpush1.bf16.xpose.msra.mxu0 0
    %409 = vmatprep.subr.bf16.mxu0 0
    %410 = vmatpush1.bf16.xpose.msra.mxu0 %v393
    %411 = vmatprep.subr.bf16.mxu0 0
    %412 = vmatpush2.bf16.xpose.msra.mxu0 0
    %413 = vmatprep.subr.bf16.mxu0 0
    %414 = vmatpush2.bf16.xpose.msra.mxu0 0
    %415 = vmatprep.subr.bf16.mxu0 0
    %416 = vmatpush2.bf16.xpose.msra.mxu0 0
    %417 = vmatprep.subr.bf16.mxu0 0
    %418 = vmatpush2.bf16.xpose.msra.mxu0 0
    %419 = vmatprep.subr.bf16.mxu0 0
    %420 = vmatpush2.bf16.xpose.msra.mxu0 0
    %421 = vmatprep.subr.bf16.mxu0 0
    %422 = vmatpush2.bf16.xpose.msra.mxu0 0
    %423 = vmatprep.subr.bf16.mxu0 0
    %424 = vmatpush2.bf16.xpose.msra.mxu0 0
    %425 = vmatprep.subr.bf16.mxu0 0
    %426 = vmatpush2.bf16.xpose.msra.mxu0 0
    %427 = vmatprep.mubr.bf16.mxu0 0
    %428 = vmatmul.mubr.bf16.gmra.mxu0 %v392
    %v429 = vpop.f32.mrf.mxu0
    %v430 = vadd.f32 %v130, %v429
    %v431 = vpop.f32.mrf.mxu0
    %v432 = vpop.f32.mrf.mxu0
    %v433 = vadd.f32 %v131, %v432
    %v434 = vpop.f32.mrf.mxu0
    %435 = vdwg.mxu0
    %v436 = vmul.f32 %v430, 1.442695
    %v437 = vpow.pop %v436
    %v438 = vmul.f32 %v433, 1.442695
    %v439 = vpow.pop %v438
    %vm440 = vcmask 130048
    %v441 = vsel %vm440, %v437, 0.0
    %442 = vadd.xlane.f32.xlu0 %v441
    %v443 = vpop.xlane.xlu0 %442
    %v444 = vsel %vm440, %v439, 0.0
    %445 = vadd.xlane.f32.xlu0 %v444
    %v446 = vpop.xlane.xlu0 %445
    %v447 = vrcp.pop %v443
    %v448 = vrcp.pop %v446
    %v449 = vmul.f32 %v437, %v447
    %v450 = vmul.f32 %v439, %v448
    %v451 = vpack.c.bf16 %v450, %v449
    %v453 = vsel %vm440, %v451, 0
    %455 = vmatprep.subr.bf16.mxu0 0
    %456 = vmatpush1.bf16.msra.mxu0 0
    %457 = vmatprep.subr.bf16.mxu0 0
    %458 = vmatpush1.bf16.msra.mxu0 0
    %459 = vmatprep.subr.bf16.mxu0 0
    %460 = vmatpush1.bf16.msra.mxu0 0
    %461 = vmatprep.subr.bf16.mxu0 0
    %462 = vmatpush1.bf16.msra.mxu0 0
    %463 = vmatprep.subr.bf16.mxu0 0
    %464 = vmatpush1.bf16.msra.mxu0 0
    %465 = vmatprep.subr.bf16.mxu0 0
    %466 = vmatpush1.bf16.msra.mxu0 0
    %467 = vmatprep.subr.bf16.mxu0 0
    %468 = vmatpush1.bf16.msra.mxu0 0
    %469 = vmatprep.subr.bf16.mxu0 0
    %470 = vmatpush1.bf16.msra.mxu0 %v394
    %471 = vmatprep.subr.bf16.mxu0 0
    %472 = vmatpush2.bf16.msra.mxu0 0
    %473 = vmatprep.subr.bf16.mxu0 0
    %474 = vmatpush2.bf16.msra.mxu0 0
    %475 = vmatprep.subr.bf16.mxu0 0
    %476 = vmatpush2.bf16.msra.mxu0 0
    %477 = vmatprep.subr.bf16.mxu0 0
    %478 = vmatpush2.bf16.msra.mxu0 0
    %479 = vmatprep.subr.bf16.mxu0 0
    %480 = vmatpush2.bf16.msra.mxu0 0
    %481 = vmatprep.subr.bf16.mxu0 0
    %482 = vmatpush2.bf16.msra.mxu0 0
    %483 = vmatprep.subr.bf16.mxu0 0
    %484 = vmatpush2.bf16.msra.mxu0 0
    %485 = vmatprep.subr.bf16.mxu0 0
    %486 = vmatpush2.bf16.msra.mxu0 0
    %487 = vmatprep.mubr.bf16.mxu0 0
    %488 = vmatmul.mubr.bf16.gmra.mxu0 %v453
    %v489 = vpop.f32.mrf.mxu0
    %v490 = vadd.f32 0.0, %v489
    %v491 = vpop.f32.mrf.mxu0
    %v492 = vpop.f32.mrf.mxu0
    %v493 = vadd.f32 0.0, %v492
    %v494 = vpop.f32.mrf.mxu0
    %495 = vdwg.mxu0
    %v496 = vpack.c.bf16 %v493, %v490
    %v497 = vld [vmem:[#allocation11] sm:$0xf]
    %v498 = vld [vmem:[#allocation11 + $0x4] sm:$0xf]
    %v499 = vld [vmem:[#allocation11 + $0x8] sm:$0xf]
    %v500 = vld [vmem:[#allocation11 + $0xc] sm:$0xf]
    %v501 = vld [vmem:[#allocation11 + $0x10] sm:$0xf]
    %v502 = vld [vmem:[#allocation11 + $0x14] sm:$0xf]
    %v503 = vld [vmem:[#allocation11 + $0x18] sm:$0xf]
    %v504 = vld [vmem:[#allocation11 + $0x1c] sm:$0xf]
    %v505 = vld [vmem:[#allocation11 + $0x20] sm:$0xf]
    %v506 = vld [vmem:[#allocation11 + $0x24] sm:$0xf]
    %v507 = vld [vmem:[#allocation11 + $0x28] sm:$0xf]
    %v508 = vld [vmem:[#allocation11 + $0x2c] sm:$0xf]
    %v509 = vld [vmem:[#allocation11 + $0x30] sm:$0xf]
    %v510 = vld [vmem:[#allocation11 + $0x34] sm:$0xf]
    %v511 = vld [vmem:[#allocation11 + $0x38] sm:$0xf]
    %v512 = vld [vmem:[#allocation11 + $0x3c] sm:$0xf]
    %v513 = vlaneseq
    %v514 = vshrl.u32 %v513, 7
    %v515 = vsub.s32 1, %v514
    %v516 = vrot.slane %v132, %v515
    %v533 = vunpack.c.l.b16 %v497
    %v534 = vunpack.c.l.b16 %v498
    %v535 = vunpack.c.l.b16 %v499
    %v536 = vunpack.c.l.b16 %v500
    %v537 = vunpack.c.l.b16 %v501
    %v538 = vunpack.c.l.b16 %v502
    %v539 = vunpack.c.l.b16 %v503
    %v540 = vunpack.c.l.b16 %v504
    %v541 = vunpack.c.l.b16 %v505
    %v542 = vunpack.c.l.b16 %v506
    %v543 = vunpack.c.l.b16 %v507
    %v544 = vunpack.c.l.b16 %v508
    %v545 = vunpack.c.l.b16 %v509
    %v546 = vunpack.c.l.b16 %v510
    %v547 = vunpack.c.l.b16 %v511
    %v548 = vunpack.c.l.b16 %v512
    %v549 = vpack.c.b16 %v534, %v533
    %v550 = vpack.c.b16 %v536, %v535
    %v551 = vpack.c.b16 %v538, %v537
    %v552 = vpack.c.b16 %v540, %v539
    %v553 = vpack.c.b16 %v542, %v541
    %v554 = vpack.c.b16 %v544, %v543
    %v555 = vpack.c.b16 %v546, %v545
    %v556 = vpack.c.b16 %v548, %v547
    %565 = vmatprep.subr.bf16.mxu0 0
    %566 = vmatpush1.bf16.msra.mxu0 %v556
    %567 = vmatprep.subr.bf16.mxu0 0
    %568 = vmatpush1.bf16.msra.mxu0 %v555
    %569 = vmatprep.subr.bf16.mxu0 0
    %570 = vmatpush1.bf16.msra.mxu0 %v554
    %571 = vmatprep.subr.bf16.mxu0 0
    %572 = vmatpush1.bf16.msra.mxu0 %v553
    %573 = vmatprep.subr.bf16.mxu0 0
    %574 = vmatpush1.bf16.msra.mxu0 %v552
    %575 = vmatprep.subr.bf16.mxu0 0
    %576 = vmatpush1.bf16.msra.mxu0 %v551
    %577 = vmatprep.subr.bf16.mxu0 0
    %578 = vmatpush1.bf16.msra.mxu0 %v550
    %579 = vmatprep.subr.bf16.mxu0 0
    %580 = vmatpush1.bf16.msra.mxu0 %v549
    %581 = vmatprep.subr.bf16.mxu0 0
    %582 = vmatpush2.bf16.msra.mxu0 0
    %583 = vmatprep.subr.bf16.mxu0 0
    %584 = vmatpush2.bf16.msra.mxu0 0
    %585 = vmatprep.subr.bf16.mxu0 0
    %586 = vmatpush2.bf16.msra.mxu0 0
    %587 = vmatprep.subr.bf16.mxu0 0
    %588 = vmatpush2.bf16.msra.mxu0 0
    %589 = vmatprep.subr.bf16.mxu0 0
    %590 = vmatpush2.bf16.msra.mxu0 0
    %591 = vmatprep.subr.bf16.mxu0 0
    %592 = vmatpush2.bf16.msra.mxu0 0
    %593 = vmatprep.subr.bf16.mxu0 0
    %594 = vmatpush2.bf16.msra.mxu0 0
    %595 = vmatprep.subr.bf16.mxu0 0
    %596 = vmatpush2.bf16.msra.mxu0 0
    %597 = vmatprep.mubr.bf16.mxu0 0
    %598 = vmatmul.mubr.bf16.gmra.mxu0 %v496
    %v599 = vpop.f32.mrf.mxu0
    %v600 = vadd.f32 %v516, %v599
    %v601 = vpop.f32.mrf.mxu0
    %v602 = vpop.f32.mrf.mxu0
    %v603 = vadd.f32 %v516, %v602
    %v604 = vpop.f32.mrf.mxu0
    %605 = vdwg.mxu0
    %v606 = vadd.f32 %v128, %v600
    %v607 = vadd.f32 %v129, %v603
    %608 = vadd.xlane.f32.xlu0 %v606
    %v609 = vpop.xlane.xlu0 %608
    %610 = vadd.xlane.f32.xlu0 %v607
    %v611 = vpop.xlane.xlu0 %610
    %v612 = vmul.f32 %v606, %v606
    %v613 = vmul.f32 %v607, %v607
    %614 = vadd.xlane.f32.xlu0 %v612
    %v615 = vpop.xlane.xlu0 %614
    %616 = vadd.xlane.f32.xlu0 %v613
    %v617 = vpop.xlane.xlu0 %616
    %v618 = vmul.f32 %v609, 0.03125
    %v619 = vmul.f32 %v611, 0.03125
    %v620 = vmul.f32 %v615, 0.03125
    %v621 = vmul.f32 %v617, 0.03125
    %v622 = vmul.f32 %v618, %v618
    %v623 = vmul.f32 %v619, %v619
    %v624 = vsub.f32 %v620, %v622
    %v625 = vsub.f32 %v621, %v623
    %v626 = vsub.f32 %v606, %v618
    %v627 = vsub.f32 %v607, %v619
    %v628 = vadd.f32 %v624, 1e-12
    %v629 = vadd.f32 %v625, 1e-12
    %v630 = vrsqrt.pop %v628
    %v631 = vrsqrt.pop %v629
    %v632 = vmul.f32 %v626, %v630
    %v633 = vmul.f32 %v627, %v631
    %v634 = vlaneseq
    %v635 = vshrl.u32 %v634, 7
    %v636 = vsub.s32 2, %v635
    %v637 = vrot.slane %v132, %v636
    %v638 = vmul.f32 %v632, %v637
    %v639 = vmul.f32 %v633, %v637
    %v640 = vlaneseq
    %v641 = vshrl.u32 %v640, 7
    %v642 = vsub.s32 3, %v641
    %v643 = vrot.slane %v132, %v642
    %v644 = vadd.f32 %v638, %v643
    %v645 = vadd.f32 %v639, %v643
    %v646 = vpack.c.bf16 %v645, %v644
    %v647 = vld [vmem:[#allocation13] sm:$0xf]
    %v648 = vld [vmem:[#allocation13 + $0x4] sm:$0xf]
    %v649 = vld [vmem:[#allocation13 + $0x8] sm:$0xf]
    %v650 = vld [vmem:[#allocation13 + $0xc] sm:$0xf]
    %v651 = vld [vmem:[#allocation13 + $0x10] sm:$0xf]
    %v652 = vld [vmem:[#allocation13 + $0x14] sm:$0xf]
    %v653 = vld [vmem:[#allocation13 + $0x18] sm:$0xf]
    %v654 = vld [vmem:[#allocation13 + $0x1c] sm:$0xf]
    %v655 = vld [vmem:[#allocation13 + $0x20] sm:$0xf]
    %v656 = vld [vmem:[#allocation13 + $0x24] sm:$0xf]
    %v657 = vld [vmem:[#allocation13 + $0x28] sm:$0xf]
    %v658 = vld [vmem:[#allocation13 + $0x2c] sm:$0xf]
    %v659 = vld [vmem:[#allocation13 + $0x30] sm:$0xf]
    %v660 = vld [vmem:[#allocation13 + $0x34] sm:$0xf]
    %v661 = vld [vmem:[#allocation13 + $0x38] sm:$0xf]
    %v662 = vld [vmem:[#allocation13 + $0x3c] sm:$0xf]
    %v663 = vlaneseq
    %v664 = vshrl.u32 %v663, 7
    %v665 = vsub.s32 4, %v664
    %v666 = vrot.slane %v132, %v665
    %v683 = vunpack.c.l.b16 %v647
    %v684 = vunpack.c.l.b16 %v648
    %v685 = vunpack.c.l.b16 %v649
    %v686 = vunpack.c.l.b16 %v650
    %v687 = vunpack.c.l.b16 %v651
    %v688 = vunpack.c.l.b16 %v652
    %v689 = vunpack.c.l.b16 %v653
    %v690 = vunpack.c.l.b16 %v654
    %v691 = vunpack.c.l.b16 %v655
    %v692 = vunpack.c.l.b16 %v656
    %v693 = vunpack.c.l.b16 %v657
    %v694 = vunpack.c.l.b16 %v658
    %v695 = vunpack.c.l.b16 %v659
    %v696 = vunpack.c.l.b16 %v660
    %v697 = vunpack.c.l.b16 %v661
    %v698 = vunpack.c.l.b16 %v662
    %v699 = vpack.c.b16 %v684, %v683
    %v700 = vpack.c.b16 %v686, %v685
    %v701 = vpack.c.b16 %v688, %v687
    %v702 = vpack.c.b16 %v690, %v689
    %v703 = vpack.c.b16 %v692, %v691
    %v704 = vpack.c.b16 %v694, %v693
    %v705 = vpack.c.b16 %v696, %v695
    %v706 = vpack.c.b16 %v698, %v697
    %715 = vmatprep.subr.bf16.mxu0 0
    %716 = vmatpush1.bf16.msra.mxu0 %v706
    %717 = vmatprep.subr.bf16.mxu0 0
    %718 = vmatpush1.bf16.msra.mxu0 %v705
    %719 = vmatprep.subr.bf16.mxu0 0
    %720 = vmatpush1.bf16.msra.mxu0 %v704
    %721 = vmatprep.subr.bf16.mxu0 0
    %722 = vmatpush1.bf16.msra.mxu0 %v703
    %723 = vmatprep.subr.bf16.mxu0 0
    %724 = vmatpush1.bf16.msra.mxu0 %v702
    %725 = vmatprep.subr.bf16.mxu0 0
    %726 = vmatpush1.bf16.msra.mxu0 %v701
    %727 = vmatprep.subr.bf16.mxu0 0
    %728 = vmatpush1.bf16.msra.mxu0 %v700
    %729 = vmatprep.subr.bf16.mxu0 0
    %730 = vmatpush1.bf16.msra.mxu0 %v699
    %731 = vmatprep.subr.bf16.mxu0 0
    %732 = vmatpush2.bf16.msra.mxu0 0
    %733 = vmatprep.subr.bf16.mxu0 0
    %734 = vmatpush2.bf16.msra.mxu0 0
    %735 = vmatprep.subr.bf16.mxu0 0
    %736 = vmatpush2.bf16.msra.mxu0 0
    %737 = vmatprep.subr.bf16.mxu0 0
    %738 = vmatpush2.bf16.msra.mxu0 0
    %739 = vmatprep.subr.bf16.mxu0 0
    %740 = vmatpush2.bf16.msra.mxu0 0
    %741 = vmatprep.subr.bf16.mxu0 0
    %742 = vmatpush2.bf16.msra.mxu0 0
    %743 = vmatprep.subr.bf16.mxu0 0
    %744 = vmatpush2.bf16.msra.mxu0 0
    %745 = vmatprep.subr.bf16.mxu0 0
    %746 = vmatpush2.bf16.msra.mxu0 0
    %747 = vmatprep.mubr.bf16.mxu0 0
    %748 = vmatmul.mubr.bf16.gmra.mxu0 %v646
    %v749 = vpop.f32.mrf.mxu0
    %v750 = vadd.f32 %v666, %v749
    %v751 = vpop.f32.mrf.mxu0
    %v752 = vpop.f32.mrf.mxu0
    %v753 = vadd.f32 %v666, %v752
    %v754 = vpop.f32.mrf.mxu0
    %755 = vdwg.mxu0
    %v756 = vmul.f32 %v750, %v750
    %v757 = vmul.f32 %v753, %v753
    %v758 = vmul.f32 %v750, %v756
    %v759 = vmul.f32 %v753, %v757
    %v760 = vmul.f32 %v758, 0.044715
    %v761 = vmul.f32 %v759, 0.044715
    %v762 = vadd.f32 %v750, %v760
    %v763 = vadd.f32 %v753, %v761
    %v764 = vmul.f32 %v762, 0.7978846
    %v765 = vmul.f32 %v763, 0.7978846
    %v766 = vtanh.pop %v764
    %v767 = vtanh.pop %v765
    %v768 = vadd.f32 %v766, 1.0
    %v769 = vadd.f32 %v767, 1.0
    %v770 = vmul.f32 %v768, 0.5
    %v771 = vmul.f32 %v769, 0.5
    %v772 = vmul.f32 %v750, %v770
    %v773 = vmul.f32 %v753, %v771
    %v774 = vpack.c.bf16 %v773, %v772
    %v775 = vld [vmem:[#allocation14] sm:$0xf]
    %v776 = vld [vmem:[#allocation14 + $0x4] sm:$0xf]
    %v777 = vld [vmem:[#allocation14 + $0x8] sm:$0xf]
    %v778 = vld [vmem:[#allocation14 + $0xc] sm:$0xf]
    %v779 = vld [vmem:[#allocation14 + $0x10] sm:$0xf]
    %v780 = vld [vmem:[#allocation14 + $0x14] sm:$0xf]
    %v781 = vld [vmem:[#allocation14 + $0x18] sm:$0xf]
    %v782 = vld [vmem:[#allocation14 + $0x1c] sm:$0xf]
    %v783 = vld [vmem:[#allocation14 + $0x20] sm:$0xf]
    %v784 = vld [vmem:[#allocation14 + $0x24] sm:$0xf]
    %v785 = vld [vmem:[#allocation14 + $0x28] sm:$0xf]
    %v786 = vld [vmem:[#allocation14 + $0x2c] sm:$0xf]
    %v787 = vld [vmem:[#allocation14 + $0x30] sm:$0xf]
    %v788 = vld [vmem:[#allocation14 + $0x34] sm:$0xf]
    %v789 = vld [vmem:[#allocation14 + $0x38] sm:$0xf]
    %v790 = vld [vmem:[#allocation14 + $0x3c] sm:$0xf]
    %v791 = vlaneseq
    %v792 = vshrl.u32 %v791, 7
    %v793 = vsub.s32 5, %v792
    %v794 = vrot.slane %v132, %v793
    %v811 = vunpack.c.l.b16 %v775
    %v812 = vunpack.c.l.b16 %v776
    %v813 = vunpack.c.l.b16 %v777
    %v814 = vunpack.c.l.b16 %v778
    %v815 = vunpack.c.l.b16 %v779
    %v816 = vunpack.c.l.b16 %v780
    %v817 = vunpack.c.l.b16 %v781
    %v818 = vunpack.c.l.b16 %v782
    %v819 = vunpack.c.l.b16 %v783
    %v820 = vunpack.c.l.b16 %v784
    %v821 = vunpack.c.l.b16 %v785
    %v822 = vunpack.c.l.b16 %v786
    %v823 = vunpack.c.l.b16 %v787
    %v824 = vunpack.c.l.b16 %v788
    %v825 = vunpack.c.l.b16 %v789
    %v826 = vunpack.c.l.b16 %v790
    %v827 = vpack.c.b16 %v812, %v811
    %v828 = vpack.c.b16 %v814, %v813
    %v829 = vpack.c.b16 %v816, %v815
    %v830 = vpack.c.b16 %v818, %v817
    %v831 = vpack.c.b16 %v820, %v819
    %v832 = vpack.c.b16 %v822, %v821
    %v833 = vpack.c.b16 %v824, %v823
    %v834 = vpack.c.b16 %v826, %v825
    %843 = vmatprep.subr.bf16.mxu0 0
    %844 = vmatpush1.bf16.msra.mxu0 %v834
    %845 = vmatprep.subr.bf16.mxu0 0
    %846 = vmatpush1.bf16.msra.mxu0 %v833
    %847 = vmatprep.subr.bf16.mxu0 0
    %848 = vmatpush1.bf16.msra.mxu0 %v832
    %849 = vmatprep.subr.bf16.mxu0 0
    %850 = vmatpush1.bf16.msra.mxu0 %v831
    %851 = vmatprep.subr.bf16.mxu0 0
    %852 = vmatpush1.bf16.msra.mxu0 %v830
    %853 = vmatprep.subr.bf16.mxu0 0
    %854 = vmatpush1.bf16.msra.mxu0 %v829
    %855 = vmatprep.subr.bf16.mxu0 0
    %856 = vmatpush1.bf16.msra.mxu0 %v828
    %857 = vmatprep.subr.bf16.mxu0 0
    %858 = vmatpush1.bf16.msra.mxu0 %v827
    %859 = vmatprep.subr.bf16.mxu0 0
    %860 = vmatpush2.bf16.msra.mxu0 0
    %861 = vmatprep.subr.bf16.mxu0 0
    %862 = vmatpush2.bf16.msra.mxu0 0
    %863 = vmatprep.subr.bf16.mxu0 0
    %864 = vmatpush2.bf16.msra.mxu0 0
    %865 = vmatprep.subr.bf16.mxu0 0
    %866 = vmatpush2.bf16.msra.mxu0 0
    %867 = vmatprep.subr.bf16.mxu0 0
    %868 = vmatpush2.bf16.msra.mxu0 0
    %869 = vmatprep.subr.bf16.mxu0 0
    %870 = vmatpush2.bf16.msra.mxu0 0
    %871 = vmatprep.subr.bf16.mxu0 0
    %872 = vmatpush2.bf16.msra.mxu0 0
    %873 = vmatprep.subr.bf16.mxu0 0
    %874 = vmatpush2.bf16.msra.mxu0 0
    %875 = vmatprep.mubr.bf16.mxu0 0
    %876 = vmatmul.mubr.bf16.gmra.mxu0 %v774
    %v877 = vpop.f32.mrf.mxu0
    %v878 = vadd.f32 %v794, %v877
    %v879 = vpop.f32.mrf.mxu0
    %v880 = vpop.f32.mrf.mxu0
    %v881 = vadd.f32 %v794, %v880
    %v882 = vpop.f32.mrf.mxu0
    %883 = vdwg.mxu0
    %v884 = vadd.f32 %v644, %v878
    %v885 = vadd.f32 %v645, %v881
    %886 = vadd.xlane.f32.xlu0 %v884
    %v887 = vpop.xlane.xlu0 %886
    %888 = vadd.xlane.f32.xlu0 %v885
    %v889 = vpop.xlane.xlu0 %888
    %v890 = vmul.f32 %v884, %v884
    %v891 = vmul.f32 %v885, %v885
    %892 = vadd.xlane.f32.xlu0 %v890
    %v893 = vpop.xlane.xlu0 %892
    %894 = vadd.xlane.f32.xlu0 %v891
    %v895 = vpop.xlane.xlu0 %894
    %v896 = vmul.f32 %v887, 0.03125
    %v897 = vmul.f32 %v889, 0.03125
    %v898 = vmul.f32 %v893, 0.03125
    %v899 = vmul.f32 %v895, 0.03125
    %v900 = vmul.f32 %v896, %v896
    %v901 = vmul.f32 %v897, %v897
    %v902 = vsub.f32 %v898, %v900
    %v903 = vsub.f32 %v899, %v901
    %v904 = vsub.f32 %v884, %v896
    %v905 = vsub.f32 %v885, %v897
    %v906 = vadd.f32 %v902, 1e-12
    %v907 = vadd.f32 %v903, 1e-12
    %v908 = vrsqrt.pop %v906
    %v909 = vrsqrt.pop %v907
    %v910 = vmul.f32 %v904, %v908
    %v911 = vmul.f32 %v905, %v909
    %v912 = vlaneseq
    %v913 = vshrl.u32 %v912, 7
    %v914 = vsub.s32 6, %v913
    %v915 = vrot.slane %v132, %v914
    %v916 = vmul.f32 %v910, %v915
    %v917 = vmul.f32 %v911, %v915
    %v918 = vlaneseq
    %v919 = vshrl.u32 %v918, 7
    %v920 = vsub.s32 7, %v919
    %v921 = vrot.slane %v132, %v920
    %v922 = vadd.f32 %v916, %v921
    %v923 = vadd.f32 %v917, %v921
    %s924 = scalar_lea.vmem [#allocation16], 24
    %v925 = vld [vmem:[%s924] sm:$0xff]
    %v926 = vld [vmem:[%s924 + $0x8] sm:$0xff]
    %v927 = vld [vmem:[%s924 + $0x10] sm:$0xff]
    %v928 = vpack.c.bf16 %v923, %v922
    %s929 = scalar_lea.vmem [#allocation10], 192
    %v930 = vld [vmem:[%s929] sm:$0xff]
    %v931 = vld [vmem:[%s929 + $0x8] sm:$0xf]
    %v932 = vld [vmem:[%s929 + $0xc] sm:$0xff]
    %v933 = vld [vmem:[%s929 + $0x14] sm:$0xf]
    %v934 = vld [vmem:[%s929 + $0x18] sm:$0xff]
    %v935 = vld [vmem:[%s929 + $0x20] sm:$0xf]
    %v936 = vld [vmem:[%s929 + $0x24] sm:$0xff]
    %v937 = vld [vmem:[%s929 + $0x2c] sm:$0xf]
    %v938 = vld [vmem:[%s929 + $0x30] sm:$0xff]
    %v939 = vld [vmem:[%s929 + $0x38] sm:$0xf]
    %v940 = vld [vmem:[%s929 + $0x3c] sm:$0xff]
    %v941 = vld [vmem:[%s929 + $0x44] sm:$0xf]
    %v942 = vld [vmem:[%s929 + $0x48] sm:$0xff]
    %v943 = vld [vmem:[%s929 + $0x50] sm:$0xf]
    %v944 = vld [vmem:[%s929 + $0x54] sm:$0xff]
    %v945 = vld [vmem:[%s929 + $0x5c] sm:$0xf]
    %v946 = vld [vmem:[%s929 + $0x60] sm:$0xff]
    %v947 = vld [vmem:[%s929 + $0x68] sm:$0xf]
    %v948 = vld [vmem:[%s929 + $0x6c] sm:$0xff]
    %v949 = vld [vmem:[%s929 + $0x74] sm:$0xf]
    %v950 = vld [vmem:[%s929 + $0x78] sm:$0xff]
    %v951 = vld [vmem:[%s929 + $0x80] sm:$0xf]
    %v952 = vld [vmem:[%s929 + $0x84] sm:$0xff]
    %v953 = vld [vmem:[%s929 + $0x8c] sm:$0xf]
    %v954 = vld [vmem:[%s929 + $0x90] sm:$0xff]
    %v955 = vld [vmem:[%s929 + $0x98] sm:$0xf]
    %v956 = vld [vmem:[%s929 + $0x9c] sm:$0xff]
    %v957 = vld [vmem:[%s929 + $0xa4] sm:$0xf]
    %v958 = vld [vmem:[%s929 + $0xa8] sm:$0xff]
    %v959 = vld [vmem:[%s929 + $0xb0] sm:$0xf]
    %v960 = vld [vmem:[%s929 + $0xb4] sm:$0xff]
    %v961 = vld [vmem:[%s929 + $0xbc] sm:$0xf]
    %v962 = vlaneseq
    %v963 = vshrl.u32 %v962, 7
    %v964 = vsub.s32 0, %v963
    %v965 = vrot.slane %v925, %v964
    %v966 = vlaneseq
    %v967 = vshrl.u32 %v966, 7
    %v968 = vsub.s32 0, %v967
    %v969 = vrot.slane %v926, %v968
    %v970 = vlaneseq
    %v971 = vshrl.u32 %v970, 7
    %v972 = vsub.s32 0, %v971
    %v973 = vrot.slane %v927, %v972
    %v1006 = vunpack.c.l.b16 %v930
    %v1007 = vunpack.c.h.b16 %v930
    %v1008 = vunpack.c.l.b16 %v931
    %v1009 = vunpack.c.l.b16 %v932
    %v1010 = vunpack.c.h.b16 %v932
    %v1011 = vunpack.c.l.b16 %v933
    %v1012 = vunpack.c.l.b16 %v934
    %v1013 = vunpack.c.h.b16 %v934
    %v1014 = vunpack.c.l.b16 %v935
    %v1015 = vunpack.c.l.b16 %v936
    %v1016 = vunpack.c.h.b16 %v936
    %v1017 = vunpack.c.l.b16 %v937
    %v1018 = vunpack.c.l.b16 %v938
    %v1019 = vunpack.c.h.b16 %v938
    %v1020 = vunpack.c.l.b16 %v939
    %v1021 = vunpack.c.l.b16 %v940
    %v1022 = vunpack.c.h.b16 %v940
    %v1023 = vunpack.c.l.b16 %v941
    %v1024 = vunpack.c.l.b16 %v942
    %v1025 = vunpack.c.h.b16 %v942
    %v1026 = vunpack.c.l.b16 %v943
    %v1027 = vunpack.c.l.b16 %v944
    %v1028 = vunpack.c.h.b16 %v944
    %v1029 = vunpack.c.l.b16 %v945
    %v1030 = vunpack.c.l.b16 %v946
    %v1031 = vunpack.c.h.b16 %v946
    %v1032 = vunpack.c.l.b16 %v947
    %v1033 = vunpack.c.l.b16 %v948
    %v1034 = vunpack.c.h.b16 %v948
    %v1035 = vunpack.c.l.b16 %v949
    %v1036 = vunpack.c.l.b16 %v950
    %v1037 = vunpack.c.h.b16 %v950
    %v1038 = vunpack.c.l.b16 %v951
    %v1039 = vunpack.c.l.b16 %v952
    %v1040 = vunpack.c.h.b16 %v952
    %v1041 = vunpack.c.l.b16 %v953
    %v1042 = vunpack.c.l.b16 %v954
    %v1043 = vunpack.c.h.b16 %v954
    %v1044 = vunpack.c.l.b16 %v955
    %v1045 = vunpack.c.l.b16 %v956
    %v1046 = vunpack.c.h.b16 %v956
    %v1047 = vunpack.c.l.b16 %v957
    %v1048 = vunpack.c.l.b16 %v958
    %v1049 = vunpack.c.h.b16 %v958
    %v1050 = vunpack.c.l.b16 %v959
    %v1051 = vunpack.c.l.b16 %v960
    %v1052 = vunpack.c.h.b16 %v960
    %v1053 = vunpack.c.l.b16 %v961
    %v1054 = vpack.c.b16 %v1009, %v1006
    %v1055 = vpack.c.b16 %v1010, %v1007
    %v1056 = vpack.c.b16 %v1011, %v1008
    %v1057 = vpack.c.b16 %v1015, %v1012
    %v1058 = vpack.c.b16 %v1016, %v1013
    %v1059 = vpack.c.b16 %v1017, %v1014
    %v1060 = vpack.c.b16 %v1021, %v1018
    %v1061 = vpack.c.b16 %v1022, %v1019
    %v1062 = vpack.c.b16 %v1023, %v1020
    %v1063 = vpack.c.b16 %v1027, %v1024
    %v1064 = vpack.c.b16 %v1028, %v1025
    %v1065 = vpack.c.b16 %v1029, %v1026
    %v1066 = vpack.c.b16 %v1033, %v1030
    %v1067 = vpack.c.b16 %v1034, %v1031
    %v1068 = vpack.c.b16 %v1035, %v1032
    %v1069 = vpack.c.b16 %v1039, %v1036
    %v1070 = vpack.c.b16 %v1040, %v1037
    %v1071 = vpack.c.b16 %v1041, %v1038
    %v1072 = vpack.c.b16 %v1045, %v1042
    %v1073 = vpack.c.b16 %v1046, %v1043
    %v1074 = vpack.c.b16 %v1047, %v1044
    %v1075 = vpack.c.b16 %v1051, %v1048
    %v1076 = vpack.c.b16 %v1052, %v1049
    %v1077 = vpack.c.b16 %v1053, %v1050
    %1102 = vmatprep.subr.bf16.mxu0 %v1076
    %1103 = vmatpush1.bf16.msra.mxu0 %v1075
    %1104 = vmatprep.subr.bf16.mxu0 %v1073
    %1105 = vmatpush1.bf16.msra.mxu0 %v1072
    %1106 = vmatprep.subr.bf16.mxu0 %v1070
    %1107 = vmatpush1.bf16.msra.mxu0 %v1069
    %1108 = vmatprep.subr.bf16.mxu0 %v1067
    %1109 = vmatpush1.bf16.msra.mxu0 %v1066
    %1110 = vmatprep.subr.bf16.mxu0 %v1064
    %1111 = vmatpush1.bf16.msra.mxu0 %v1063
    %1112 = vmatprep.subr.bf16.mxu0 %v1061
    %1113 = vmatpush1.bf16.msra.mxu0 %v1060
    %1114 = vmatprep.subr.bf16.mxu0 %v1058
    %1115 = vmatpush1.bf16.msra.mxu0 %v1057
    %1116 = vmatprep.subr.bf16.mxu0 %v1055
    %1117 = vmatpush1.bf16.msra.mxu0 %v1054
    %1118 = vmatprep.subr.bf16.mxu0 0
    %1119 = vmatpush2.bf16.msra.mxu0 0
    %1120 = vmatprep.subr.bf16.mxu0 0
    %1121 = vmatpush2.bf16.msra.mxu0 0
    %1122 = vmatprep.subr.bf16.mxu0 0
    %1123 = vmatpush2.bf16.msra.mxu0 0
    %1124 = vmatprep.subr.bf16.mxu0 0
    %1125 = vmatpush2.bf16.msra.mxu0 0
    %1126 = vmatprep.subr.bf16.mxu0 0
    %1127 = vmatpush2.bf16.msra.mxu0 0
    %1128 = vmatprep.subr.bf16.mxu0 0
    %1129 = vmatpush2.bf16.msra.mxu0 0
    %1130 = vmatprep.subr.bf16.mxu0 0
    %1131 = vmatpush2.bf16.msra.mxu0 0
    %1132 = vmatprep.subr.bf16.mxu0 0
    %1133 = vmatpush2.bf16.msra.mxu0 0
    %1134 = vmatprep.mubr.bf16.mxu0 0
    %1135 = vmatmul.mubr.bf16.gmra.mxu0 %v928
    %v1136 = vpop.f32.mrf.mxu0
    %v1137 = vadd.f32 %v965, %v1136
    %v1138 = vpop.f32.mrf.mxu0
    %v1139 = vadd.f32 %v969, %v1138
    %v1140 = vpop.f32.mrf.mxu0
    %v1141 = vadd.f32 %v965, %v1140
    %v1142 = vpop.f32.mrf.mxu0
    %v1143 = vadd.f32 %v969, %v1142
    %1144 = vdwg.mxu0
    %1145 = vmatprep.subr.bf16.mxu0 0
    %1146 = vmatpush1.bf16.msra.mxu0 %v1077
    %1147 = vmatprep.subr.bf16.mxu0 0
    %1148 = vmatpush1.bf16.msra.mxu0 %v1074
    %1149 = vmatprep.subr.bf16.mxu0 0
    %1150 = vmatpush1.bf16.msra.mxu0 %v1071
    %1151 = vmatprep.subr.bf16.mxu0 0
    %1152 = vmatpush1.bf16.msra.mxu0 %v1068
    %1153 = vmatprep.subr.bf16.mxu0 0
    %1154 = vmatpush1.bf16.msra.mxu0 %v1065
    %1155 = vmatprep.subr.bf16.mxu0 0
    %1156 = vmatpush1.bf16.msra.mxu0 %v1062
    %1157 = vmatprep.subr.bf16.mxu0 0
    %1158 = vmatpush1.bf16.msra.mxu0 %v1059
    %1159 = vmatprep.subr.bf16.mxu0 0
    %1160 = vmatpush1.bf16.msra.mxu0 %v1056
    %1161 = vmatprep.subr.bf16.mxu0 0
    %1162 = vmatpush2.bf16.msra.mxu0 0
    %1163 = vmatprep.subr.bf16.mxu0 0
    %1164 = vmatpush2.bf16.msra.mxu0 0
    %1165 = vmatprep.subr.bf16.mxu0 0
    %1166 = vmatpush2.bf16.msra.mxu0 0
    %1167 = vmatprep.subr.bf16.mxu0 0
    %1168 = vmatpush2.bf16.msra.mxu0 0
    %1169 = vmatprep.subr.bf16.mxu0 0
    %1170 = vmatpush2.bf16.msra.mxu0 0
    %1171 = vmatprep.subr.bf16.mxu0 0
    %1172 = vmatpush2.bf16.msra.mxu0 0
    %1173 = vmatprep.subr.bf16.mxu0 0
    %1174 = vmatpush2.bf16.msra.mxu0 0
    %1175 = vmatprep.subr.bf16.mxu0 0
    %1176 = vmatpush2.bf16.msra.mxu0 0
    %1177 = vmatprep.mubr.bf16.mxu0 0
    %1178 = vmatmul.mubr.bf16.gmra.mxu0 %v928
    %v1179 = vpop.f32.mrf.mxu0
    %v1180 = vadd.f32 %v973, %v1179
    %v1181 = vpop.f32.mrf.mxu0
    %v1182 = vpop.f32.mrf.mxu0
    %v1183 = vadd.f32 %v973, %v1182
    %v1184 = vpop.f32.mrf.mxu0
    %1185 = vdwg.mxu0
    %v1186 = vpack.c.bf16 %v1141, %v1137
    %v1187 = vpack.c.bf16 %v1143, %v1139
    %v1188 = vpack.c.bf16 %v1183, %v1180
    %1189 = vmatprep.subr.bf16.mxu0 0
    %1190 = vmatpush1.bf16.xpose.msra.mxu0 0
    %1191 = vmatprep.subr.bf16.mxu0 0
    %1192 = vmatpush1.bf16.xpose.msra.mxu0 0
    %1193 = vmatprep.subr.bf16.mxu0 0
    %1194 = vmatpush1.bf16.xpose.msra.mxu0 0
    %1195 = vmatprep.subr.bf16.mxu0 0
    %1196 = vmatpush1.bf16.xpose.msra.mxu0 0
    %1197 = vmatprep.subr.bf16.mxu0 0
    %1198 = vmatpush1.bf16.xpose.msra.mxu0 0
    %1199 = vmatprep.subr.bf16.mxu0 0
    %1200 = vmatpush1.bf16.xpose.msra.mxu0 0
    %1201 = vmatprep.subr.bf16.mxu0 0
    %1202 = vmatpush1.bf16.xpose.msra.mxu0 0
    %1203 = vmatprep.subr.bf16.mxu0 0
    %1204 = vmatpush1.bf16.xpose.msra.mxu0 %v1187
    %1205 = vmatprep.subr.bf16.mxu0 0
    %1206 = vmatpush2.bf16.xpose.msra.mxu0 0
    %1207 = vmatprep.subr.bf16.mxu0 0
    %1208 = vmatpush2.bf16.xpose.msra.mxu0 0
    %1209 = vmatprep.subr.bf16.mxu0 0
    %1210 = vmatpush2.bf16.xpose.msra.mxu0 0
    %1211 = vmatprep.subr.bf16.mxu0 0
    %1212 = vmatpush2.bf16.xpose.msra.mxu0 0
    %1213 = vmatprep.subr.bf16.mxu0 0
    %1214 = vmatpush2.bf16.xpose.msra.mxu0 0
    %1215 = vmatprep.subr.bf16.mxu0 0
    %1216 = vmatpush2.bf16.xpose.msra.mxu0 0
    %1217 = vmatprep.subr.bf16.mxu0 0
    %1218 = vmatpush2.bf16.xpose.msra.mxu0 0
    %1219 = vmatprep.subr.bf16.mxu0 0
    %1220 = vmatpush2.bf16.xpose.msra.mxu0 0
    %1221 = vmatprep.mubr.bf16.mxu0 0
    %1222 = vmatmul.mubr.bf16.gmra.mxu0 %v1186
    %v1223 = vpop.f32.mrf.mxu0
    %v1224 = vadd.f32 %v130, %v1223
    %v1225 = vpop.f32.mrf.mxu0
    %v1226 = vpop.f32.mrf.mxu0
    %v1227 = vadd.f32 %v131, %v1226
    %v1228 = vpop.f32.mrf.mxu0
    %1229 = vdwg.mxu0
    %v1230 = vmul.f32 %v1224, 1.442695
    %v1231 = vpow.pop %v1230
    %v1232 = vmul.f32 %v1227, 1.442695
    %v1233 = vpow.pop %v1232
    %v1234 = vsel %vm440, %v1231, 0.0
    %1235 = vadd.xlane.f32.xlu0 %v1234
    %v1236 = vpop.xlane.xlu0 %1235
    %v1237 = vsel %vm440, %v1233, 0.0
    %1238 = vadd.xlane.f32.xlu0 %v1237
    %v1239 = vpop.xlane.xlu0 %1238
    %v1240 = vrcp.pop %v1236
    %v1241 = vrcp.pop %v1239
    %v1242 = vmul.f32 %v1231, %v1240
    %v1243 = vmul.f32 %v1233, %v1241
    %v1244 = vpack.c.bf16 %v1243, %v1242
    %v1246 = vsel %vm440, %v1244, 0
    %1248 = vmatprep.subr.bf16.mxu0 0
    %1249 = vmatpush1.bf16.msra.mxu0 0
    %1250 = vmatprep.subr.bf16.mxu0 0
    %1251 = vmatpush1.bf16.msra.mxu0 0
    %1252 = vmatprep.subr.bf16.mxu0 0
    %1253 = vmatpush1.bf16.msra.mxu0 0
    %1254 = vmatprep.subr.bf16.mxu0 0
    %1255 = vmatpush1.bf16.msra.mxu0 0
    %1256 = vmatprep.subr.bf16.mxu0 0
    %1257 = vmatpush1.bf16.msra.mxu0 0
    %1258 = vmatprep.subr.bf16.mxu0 0
    %1259 = vmatpush1.bf16.msra.mxu0 0
    %1260 = vmatprep.subr.bf16.mxu0 0
    %1261 = vmatpush1.bf16.msra.mxu0 0
    %1262 = vmatprep.subr.bf16.mxu0 0
    %1263 = vmatpush1.bf16.msra.mxu0 %v1188
    %1264 = vmatprep.subr.bf16.mxu0 0
    %1265 = vmatpush2.bf16.msra.mxu0 0
    %1266 = vmatprep.subr.bf16.mxu0 0
    %1267 = vmatpush2.bf16.msra.mxu0 0
    %1268 = vmatprep.subr.bf16.mxu0 0
    %1269 = vmatpush2.bf16.msra.mxu0 0
    %1270 = vmatprep.subr.bf16.mxu0 0
    %1271 = vmatpush2.bf16.msra.mxu0 0
    %1272 = vmatprep.subr.bf16.mxu0 0
    %1273 = vmatpush2.bf16.msra.mxu0 0
    %1274 = vmatprep.subr.bf16.mxu0 0
    %1275 = vmatpush2.bf16.msra.mxu0 0
    %1276 = vmatprep.subr.bf16.mxu0 0
    %1277 = vmatpush2.bf16.msra.mxu0 0
    %1278 = vmatprep.subr.bf16.mxu0 0
    %1279 = vmatpush2.bf16.msra.mxu0 0
    %1280 = vmatprep.mubr.bf16.mxu0 0
    %1281 = vmatmul.mubr.bf16.gmra.mxu0 %v1246
    %v1282 = vpop.f32.mrf.mxu0
    %v1283 = vadd.f32 0.0, %v1282
    %v1284 = vpop.f32.mrf.mxu0
    %v1285 = vpop.f32.mrf.mxu0
    %v1286 = vadd.f32 0.0, %v1285
    %v1287 = vpop.f32.mrf.mxu0
    %1288 = vdwg.mxu0
    %v1289 = vpack.c.bf16 %v1286, %v1283
    %s1290 = scalar_lea.vmem [#allocation11], 64
    %v1291 = vld [vmem:[%s1290] sm:$0xf]
    %v1292 = vld [vmem:[%s1290 + $0x4] sm:$0xf]
    %v1293 = vld [vmem:[%s1290 + $0x8] sm:$0xf]
    %v1294 = vld [vmem:[%s1290 + $0xc] sm:$0xf]
    %v1295 = vld [vmem:[%s1290 + $0x10] sm:$0xf]
    %v1296 = vld [vmem:[%s1290 + $0x14] sm:$0xf]
    %v1297 = vld [vmem:[%s1290 + $0x18] sm:$0xf]
    %v1298 = vld [vmem:[%s1290 + $0x1c] sm:$0xf]
    %v1299 = vld [vmem:[%s1290 + $0x20] sm:$0xf]
    %v1300 = vld [vmem:[%s1290 + $0x24] sm:$0xf]
    %v1301 = vld [vmem:[%s1290 + $0x28] sm:$0xf]
    %v1302 = vld [vmem:[%s1290 + $0x2c] sm:$0xf]
    %v1303 = vld [vmem:[%s1290 + $0x30] sm:$0xf]
    %v1304 = vld [vmem:[%s1290 + $0x34] sm:$0xf]
    %v1305 = vld [vmem:[%s1290 + $0x38] sm:$0xf]
    %v1306 = vld [vmem:[%s1290 + $0x3c] sm:$0xf]
    %v1307 = vlaneseq
    %v1308 = vshrl.u32 %v1307, 7
    %v1309 = vsub.s32 1, %v1308
    %v1310 = vrot.slane %v925, %v1309
    %v1327 = vunpack.c.l.b16 %v1291
    %v1328 = vunpack.c.l.b16 %v1292
    %v1329 = vunpack.c.l.b16 %v1293
    %v1330 = vunpack.c.l.b16 %v1294
    %v1331 = vunpack.c.l.b16 %v1295
    %v1332 = vunpack.c.l.b16 %v1296
    %v1333 = vunpack.c.l.b16 %v1297
    %v1334 = vunpack.c.l.b16 %v1298
    %v1335 = vunpack.c.l.b16 %v1299
    %v1336 = vunpack.c.l.b16 %v1300
    %v1337 = vunpack.c.l.b16 %v1301
    %v1338 = vunpack.c.l.b16 %v1302
    %v1339 = vunpack.c.l.b16 %v1303
    %v1340 = vunpack.c.l.b16 %v1304
    %v1341 = vunpack.c.l.b16 %v1305
    %v1342 = vunpack.c.l.b16 %v1306
    %v1343 = vpack.c.b16 %v1328, %v1327
    %v1344 = vpack.c.b16 %v1330, %v1329
    %v1345 = vpack.c.b16 %v1332, %v1331
    %v1346 = vpack.c.b16 %v1334, %v1333
    %v1347 = vpack.c.b16 %v1336, %v1335
    %v1348 = vpack.c.b16 %v1338, %v1337
    %v1349 = vpack.c.b16 %v1340, %v1339
    %v1350 = vpack.c.b16 %v1342, %v1341
    %1359 = vmatprep.subr.bf16.mxu0 0
    %1360 = vmatpush1.bf16.msra.mxu0 %v1350
    %1361 = vmatprep.subr.bf16.mxu0 0
    %1362 = vmatpush1.bf16.msra.mxu0 %v1349
    %1363 = vmatprep.subr.bf16.mxu0 0
    %1364 = vmatpush1.bf16.msra.mxu0 %v1348
    %1365 = vmatprep.subr.bf16.mxu0 0
    %1366 = vmatpush1.bf16.msra.mxu0 %v1347
    %1367 = vmatprep.subr.bf16.mxu0 0
    %1368 = vmatpush1.bf16.msra.mxu0 %v1346
    %1369 = vmatprep.subr.bf16.mxu0 0
    %1370 = vmatpush1.bf16.msra.mxu0 %v1345
    %1371 = vmatprep.subr.bf16.mxu0 0
    %1372 = vmatpush1.bf16.msra.mxu0 %v1344
    %1373 = vmatprep.subr.bf16.mxu0 0
    %1374 = vmatpush1.bf16.msra.mxu0 %v1343
    %1375 = vmatprep.subr.bf16.mxu0 0
    %1376 = vmatpush2.bf16.msra.mxu0 0
    %1377 = vmatprep.subr.bf16.mxu0 0
    %1378 = vmatpush2.bf16.msra.mxu0 0
    %1379 = vmatprep.subr.bf16.mxu0 0
    %1380 = vmatpush2.bf16.msra.mxu0 0
    %1381 = vmatprep.subr.bf16.mxu0 0
    %1382 = vmatpush2.bf16.msra.mxu0 0
    %1383 = vmatprep.subr.bf16.mxu0 0
    %1384 = vmatpush2.bf16.msra.mxu0 0
    %1385 = vmatprep.subr.bf16.mxu0 0
    %1386 = vmatpush2.bf16.msra.mxu0 0
    %1387 = vmatprep.subr.bf16.mxu0 0
    %1388 = vmatpush2.bf16.msra.mxu0 0
    %1389 = vmatprep.subr.bf16.mxu0 0
    %1390 = vmatpush2.bf16.msra.mxu0 0
    %1391 = vmatprep.mubr.bf16.mxu0 0
    %1392 = vmatmul.mubr.bf16.gmra.mxu0 %v1289
    %v1393 = vpop.f32.mrf.mxu0
    %v1394 = vadd.f32 %v1310, %v1393
    %v1395 = vpop.f32.mrf.mxu0
    %v1396 = vpop.f32.mrf.mxu0
    %v1397 = vadd.f32 %v1310, %v1396
    %v1398 = vpop.f32.mrf.mxu0
    %1399 = vdwg.mxu0
    %v1400 = vadd.f32 %v922, %v1394
    %v1401 = vadd.f32 %v923, %v1397
    %1402 = vadd.xlane.f32.xlu0 %v1400
    %v1403 = vpop.xlane.xlu0 %1402
    %1404 = vadd.xlane.f32.xlu0 %v1401
    %v1405 = vpop.xlane.xlu0 %1404
    %v1406 = vmul.f32 %v1400, %v1400
    %v1407 = vmul.f32 %v1401, %v1401
    %1408 = vadd.xlane.f32.xlu0 %v1406
    %v1409 = vpop.xlane.xlu0 %1408
    %1410 = vadd.xlane.f32.xlu0 %v1407
    %v1411 = vpop.xlane.xlu0 %1410
    %v1412 = vmul.f32 %v1403, 0.03125
    %v1413 = vmul.f32 %v1405, 0.03125
    %v1414 = vmul.f32 %v1409, 0.03125
    %v1415 = vmul.f32 %v1411, 0.03125
    %v1416 = vmul.f32 %v1412, %v1412
    %v1417 = vmul.f32 %v1413, %v1413
    %v1418 = vsub.f32 %v1414, %v1416
    %v1419 = vsub.f32 %v1415, %v1417
    %v1420 = vsub.f32 %v1400, %v1412
    %v1421 = vsub.f32 %v1401, %v1413
    %v1422 = vadd.f32 %v1418, 1e-12
    %v1423 = vadd.f32 %v1419, 1e-12
    %v1424 = vrsqrt.pop %v1422
    %v1425 = vrsqrt.pop %v1423
    %v1426 = vmul.f32 %v1420, %v1424
    %v1427 = vmul.f32 %v1421, %v1425
    %v1428 = vlaneseq
    %v1429 = vshrl.u32 %v1428, 7
    %v1430 = vsub.s32 2, %v1429
    %v1431 = vrot.slane %v925, %v1430
    %v1432 = vmul.f32 %v1426, %v1431
    %v1433 = vmul.f32 %v1427, %v1431
    %v1434 = vlaneseq
    %v1435 = vshrl.u32 %v1434, 7
    %v1436 = vsub.s32 3, %v1435
    %v1437 = vrot.slane %v925, %v1436
    %v1438 = vadd.f32 %v1432, %v1437
    %v1439 = vadd.f32 %v1433, %v1437
    %v1440 = vpack.c.bf16 %v1439, %v1438
    %s1441 = scalar_lea.vmem [#allocation13], 64
    %v1442 = vld [vmem:[%s1441] sm:$0xf]
    %v1443 = vld [vmem:[%s1441 + $0x4] sm:$0xf]
    %v1444 = vld [vmem:[%s1441 + $0x8] sm:$0xf]
    %v1445 = vld [vmem:[%s1441 + $0xc] sm:$0xf]
    %v1446 = vld [vmem:[%s1441 + $0x10] sm:$0xf]
    %v1447 = vld [vmem:[%s1441 + $0x14] sm:$0xf]
    %v1448 = vld [vmem:[%s1441 + $0x18] sm:$0xf]
    %v1449 = vld [vmem:[%s1441 + $0x1c] sm:$0xf]
    %v1450 = vld [vmem:[%s1441 + $0x20] sm:$0xf]
    %v1451 = vld [vmem:[%s1441 + $0x24] sm:$0xf]
    %v1452 = vld [vmem:[%s1441 + $0x28] sm:$0xf]
    %v1453 = vld [vmem:[%s1441 + $0x2c] sm:$0xf]
    %v1454 = vld [vmem:[%s1441 + $0x30] sm:$0xf]
    %v1455 = vld [vmem:[%s1441 + $0x34] sm:$0xf]
    %v1456 = vld [vmem:[%s1441 + $0x38] sm:$0xf]
    %v1457 = vld [vmem:[%s1441 + $0x3c] sm:$0xf]
    %v1458 = vlaneseq
    %v1459 = vshrl.u32 %v1458, 7
    %v1460 = vsub.s32 4, %v1459
    %v1461 = vrot.slane %v925, %v1460
    %v1478 = vunpack.c.l.b16 %v1442
    %v1479 = vunpack.c.l.b16 %v1443
    %v1480 = vunpack.c.l.b16 %v1444
    %v1481 = vunpack.c.l.b16 %v1445
    %v1482 = vunpack.c.l.b16 %v1446
    %v1483 = vunpack.c.l.b16 %v1447
    %v1484 = vunpack.c.l.b16 %v1448
    %v1485 = vunpack.c.l.b16 %v1449
    %v1486 = vunpack.c.l.b16 %v1450
    %v1487 = vunpack.c.l.b16 %v1451
    %v1488 = vunpack.c.l.b16 %v1452
    %v1489 = vunpack.c.l.b16 %v1453
    %v1490 = vunpack.c.l.b16 %v1454
    %v1491 = vunpack.c.l.b16 %v1455
    %v1492 = vunpack.c.l.b16 %v1456
    %v1493 = vunpack.c.l.b16 %v1457
    %v1494 = vpack.c.b16 %v1479, %v1478
    %v1495 = vpack.c.b16 %v1481, %v1480
    %v1496 = vpack.c.b16 %v1483, %v1482
    %v1497 = vpack.c.b16 %v1485, %v1484
    %v1498 = vpack.c.b16 %v1487, %v1486
    %v1499 = vpack.c.b16 %v1489, %v1488
    %v1500 = vpack.c.b16 %v1491, %v1490
    %v1501 = vpack.c.b16 %v1493, %v1492
    %1510 = vmatprep.subr.bf16.mxu0 0
    %1511 = vmatpush1.bf16.msra.mxu0 %v1501
    %1512 = vmatprep.subr.bf16.mxu0 0
    %1513 = vmatpush1.bf16.msra.mxu0 %v1500
    %1514 = vmatprep.subr.bf16.mxu0 0
    %1515 = vmatpush1.bf16.msra.mxu0 %v1499
    %1516 = vmatprep.subr.bf16.mxu0 0
    %1517 = vmatpush1.bf16.msra.mxu0 %v1498
    %1518 = vmatprep.subr.bf16.mxu0 0
    %1519 = vmatpush1.bf16.msra.mxu0 %v1497
    %1520 = vmatprep.subr.bf16.mxu0 0
    %1521 = vmatpush1.bf16.msra.mxu0 %v1496
    %1522 = vmatprep.subr.bf16.mxu0 0
    %1523 = vmatpush1.bf16.msra.mxu0 %v1495
    %1524 = vmatprep.subr.bf16.mxu0 0
    %1525 = vmatpush1.bf16.msra.mxu0 %v1494
    %1526 = vmatprep.subr.bf16.mxu0 0
    %1527 = vmatpush2.bf16.msra.mxu0 0
    %1528 = vmatprep.subr.bf16.mxu0 0
    %1529 = vmatpush2.bf16.msra.mxu0 0
    %1530 = vmatprep.subr.bf16.mxu0 0
    %1531 = vmatpush2.bf16.msra.mxu0 0
    %1532 = vmatprep.subr.bf16.mxu0 0
    %1533 = vmatpush2.bf16.msra.mxu0 0
    %1534 = vmatprep.subr.bf16.mxu0 0
    %1535 = vmatpush2.bf16.msra.mxu0 0
    %1536 = vmatprep.subr.bf16.mxu0 0
    %1537 = vmatpush2.bf16.msra.mxu0 0
    %1538 = vmatprep.subr.bf16.mxu0 0
    %1539 = vmatpush2.bf16.msra.mxu0 0
    %1540 = vmatprep.subr.bf16.mxu0 0
    %1541 = vmatpush2.bf16.msra.mxu0 0
    %1542 = vmatprep.mubr.bf16.mxu0 0
    %1543 = vmatmul.mubr.bf16.gmra.mxu0 %v1440
    %v1544 = vpop.f32.mrf.mxu0
    %v1545 = vadd.f32 %v1461, %v1544
    %v1546 = vpop.f32.mrf.mxu0
    %v1547 = vpop.f32.mrf.mxu0
    %v1548 = vadd.f32 %v1461, %v1547
    %v1549 = vpop.f32.mrf.mxu0
    %1550 = vdwg.mxu0
    %v1551 = vmul.f32 %v1545, %v1545
    %v1552 = vmul.f32 %v1548, %v1548
    %v1553 = vmul.f32 %v1545, %v1551
    %v1554 = vmul.f32 %v1548, %v1552
    %v1555 = vmul.f32 %v1553, 0.044715
    %v1556 = vmul.f32 %v1554, 0.044715
    %v1557 = vadd.f32 %v1545, %v1555
    %v1558 = vadd.f32 %v1548, %v1556
    %v1559 = vmul.f32 %v1557, 0.7978846
    %v1560 = vmul.f32 %v1558, 0.7978846
    %v1561 = vtanh.pop %v1559
    %v1562 = vtanh.pop %v1560
    %v1563 = vadd.f32 %v1561, 1.0
    %v1564 = vadd.f32 %v1562, 1.0
    %v1565 = vmul.f32 %v1563, 0.5
    %v1566 = vmul.f32 %v1564, 0.5
    %v1567 = vmul.f32 %v1545, %v1565
    %v1568 = vmul.f32 %v1548, %v1566
    %v1569 = vpack.c.bf16 %v1568, %v1567
    %s1570 = scalar_lea.vmem [#allocation14], 64
    %v1571 = vld [vmem:[%s1570] sm:$0xf]
    %v1572 = vld [vmem:[%s1570 + $0x4] sm:$0xf]
    %v1573 = vld [vmem:[%s1570 + $0x8] sm:$0xf]
    %v1574 = vld [vmem:[%s1570 + $0xc] sm:$0xf]
    %v1575 = vld [vmem:[%s1570 + $0x10] sm:$0xf]
    %v1576 = vld [vmem:[%s1570 + $0x14] sm:$0xf]
    %v1577 = vld [vmem:[%s1570 + $0x18] sm:$0xf]
    %v1578 = vld [vmem:[%s1570 + $0x1c] sm:$0xf]
    %v1579 = vld [vmem:[%s1570 + $0x20] sm:$0xf]
    %v1580 = vld [vmem:[%s1570 + $0x24] sm:$0xf]
    %v1581 = vld [vmem:[%s1570 + $0x28] sm:$0xf]
    %v1582 = vld [vmem:[%s1570 + $0x2c] sm:$0xf]
    %v1583 = vld [vmem:[%s1570 + $0x30] sm:$0xf]
    %v1584 = vld [vmem:[%s1570 + $0x34] sm:$0xf]
    %v1585 = vld [vmem:[%s1570 + $0x38] sm:$0xf]
    %v1586 = vld [vmem:[%s1570 + $0x3c] sm:$0xf]
    %v1587 = vlaneseq
    %v1588 = vshrl.u32 %v1587, 7
    %v1589 = vsub.s32 5, %v1588
    %v1590 = vrot.slane %v925, %v1589
    %v1607 = vunpack.c.l.b16 %v1571
    %v1608 = vunpack.c.l.b16 %v1572
    %v1609 = vunpack.c.l.b16 %v1573
    %v1610 = vunpack.c.l.b16 %v1574
    %v1611 = vunpack.c.l.b16 %v1575
    %v1612 = vunpack.c.l.b16 %v1576
    %v1613 = vunpack.c.l.b16 %v1577
    %v1614 = vunpack.c.l.b16 %v1578
    %v1615 = vunpack.c.l.b16 %v1579
    %v1616 = vunpack.c.l.b16 %v1580
    %v1617 = vunpack.c.l.b16 %v1581
    %v1618 = vunpack.c.l.b16 %v1582
    %v1619 = vunpack.c.l.b16 %v1583
    %v1620 = vunpack.c.l.b16 %v1584
    %v1621 = vunpack.c.l.b16 %v1585
    %v1622 = vunpack.c.l.b16 %v1586
    %v1623 = vpack.c.b16 %v1608, %v1607
    %v1624 = vpack.c.b16 %v1610, %v1609
    %v1625 = vpack.c.b16 %v1612, %v1611
    %v1626 = vpack.c.b16 %v1614, %v1613
    %v1627 = vpack.c.b16 %v1616, %v1615
    %v1628 = vpack.c.b16 %v1618, %v1617
    %v1629 = vpack.c.b16 %v1620, %v1619
    %v1630 = vpack.c.b16 %v1622, %v1621
    %1639 = vmatprep.subr.bf16.mxu0 0
    %1640 = vmatpush1.bf16.msra.mxu0 %v1630
    %1641 = vmatprep.subr.bf16.mxu0 0
    %1642 = vmatpush1.bf16.msra.mxu0 %v1629
    %1643 = vmatprep.subr.bf16.mxu0 0
    %1644 = vmatpush1.bf16.msra.mxu0 %v1628
    %1645 = vmatprep.subr.bf16.mxu0 0
    %1646 = vmatpush1.bf16.msra.mxu0 %v1627
    %1647 = vmatprep.subr.bf16.mxu0 0
    %1648 = vmatpush1.bf16.msra.mxu0 %v1626
    %1649 = vmatprep.subr.bf16.mxu0 0
    %1650 = vmatpush1.bf16.msra.mxu0 %v1625
    %1651 = vmatprep.subr.bf16.mxu0 0
    %1652 = vmatpush1.bf16.msra.mxu0 %v1624
    %1653 = vmatprep.subr.bf16.mxu0 0
    %1654 = vmatpush1.bf16.msra.mxu0 %v1623
    %1655 = vmatprep.subr.bf16.mxu0 0
    %1656 = vmatpush2.bf16.msra.mxu0 0
    %1657 = vmatprep.subr.bf16.mxu0 0
    %1658 = vmatpush2.bf16.msra.mxu0 0
    %1659 = vmatprep.subr.bf16.mxu0 0
    %1660 = vmatpush2.bf16.msra.mxu0 0
    %1661 = vmatprep.subr.bf16.mxu0 0
    %1662 = vmatpush2.bf16.msra.mxu0 0
    %1663 = vmatprep.subr.bf16.mxu0 0
    %1664 = vmatpush2.bf16.msra.mxu0 0
    %1665 = vmatprep.subr.bf16.mxu0 0
    %1666 = vmatpush2.bf16.msra.mxu0 0
    %1667 = vmatprep.subr.bf16.mxu0 0
    %1668 = vmatpush2.bf16.msra.mxu0 0
    %1669 = vmatprep.subr.bf16.mxu0 0
    %1670 = vmatpush2.bf16.msra.mxu0 0
    %1671 = vmatprep.mubr.bf16.mxu0 0
    %1672 = vmatmul.mubr.bf16.gmra.mxu0 %v1569
    %v1673 = vpop.f32.mrf.mxu0
    %v1674 = vadd.f32 %v1590, %v1673
    %v1675 = vpop.f32.mrf.mxu0
    %v1676 = vpop.f32.mrf.mxu0
    %v1677 = vadd.f32 %v1590, %v1676
    %v1678 = vpop.f32.mrf.mxu0
    %1679 = vdwg.mxu0
    %v1680 = vadd.f32 %v1438, %v1674
    %v1681 = vadd.f32 %v1439, %v1677
    %1682 = vadd.xlane.f32.xlu0 %v1680
    %v1683 = vpop.xlane.xlu0 %1682
    %1684 = vadd.xlane.f32.xlu0 %v1681
    %v1685 = vpop.xlane.xlu0 %1684
    %v1686 = vmul.f32 %v1680, %v1680
    %v1687 = vmul.f32 %v1681, %v1681
    %1688 = vadd.xlane.f32.xlu0 %v1686
    %v1689 = vpop.xlane.xlu0 %1688
    %1690 = vadd.xlane.f32.xlu0 %v1687
    %v1691 = vpop.xlane.xlu0 %1690
    %v1692 = vmul.f32 %v1683, 0.03125
    %v1693 = vmul.f32 %v1685, 0.03125
    %v1694 = vmul.f32 %v1689, 0.03125
    %v1695 = vmul.f32 %v1691, 0.03125
    %v1696 = vmul.f32 %v1692, %v1692
    %v1697 = vmul.f32 %v1693, %v1693
    %v1698 = vsub.f32 %v1694, %v1696
    %v1699 = vsub.f32 %v1695, %v1697
    %v1700 = vsub.f32 %v1680, %v1692
    %v1701 = vsub.f32 %v1681, %v1693
    %v1702 = vadd.f32 %v1698, 1e-12
    %v1703 = vadd.f32 %v1699, 1e-12
    %v1704 = vrsqrt.pop %v1702
    %v1705 = vrsqrt.pop %v1703
    %v1706 = vmul.f32 %v1700, %v1704
    %v1707 = vmul.f32 %v1701, %v1705
    %v1708 = vlaneseq
    %v1709 = vshrl.u32 %v1708, 7
    %v1710 = vsub.s32 6, %v1709
    %v1711 = vrot.slane %v925, %v1710
    %v1712 = vmul.f32 %v1706, %v1711
    %v1713 = vmul.f32 %v1707, %v1711
    %v1714 = vlaneseq
    %v1715 = vshrl.u32 %v1714, 7
    %v1716 = vsub.s32 7, %v1715
    %v1717 = vrot.slane %v925, %v1716
    %v1718 = vadd.f32 %v1712, %v1717
    %v1719 = vadd.f32 %v1713, %v1717
    %1720 = vst [vmem:[#allocation2] sm:$0xff] %v1718
    %1721 = vst [vmem:[#allocation2 + $0x8] sm:$0xff] %v1719
    %s1722 = sld [smem:[#allocation4]]
    %s1723 = scalar_lea.vmem [#allocation2], %s1722
    %v1724 = vld [vmem:[%s1723] sm:$0x1]
    %1725 = vst [vmem:[#allocation17] sm:$0x1] %v1724
    %s1726 = sld [smem:[#allocation4 + $0x1]]
    %s1727 = scalar_lea.vmem [#allocation2], %s1726
    %v1728 = vld [vmem:[%s1727] sm:$0x1]
    %1729 = vst [vmem:[#allocation17 + $0x1] sm:$0x1] %v1728
    %s1730 = sld [smem:[#allocation4 + $0x2]]
    %s1731 = scalar_lea.vmem [#allocation2], %s1730
    %v1732 = vld [vmem:[%s1731] sm:$0x1]
    %1733 = vst [vmem:[#allocation17 + $0x2] sm:$0x1] %v1732
    %s1734 = sld [smem:[#allocation4 + $0x3]]
    %s1735 = scalar_lea.vmem [#allocation2], %s1734
    %v1736 = vld [vmem:[%s1735] sm:$0x1]
    %1737 = vst [vmem:[#allocation17 + $0x3] sm:$0x1] %v1736
    // Predicated region
    $region58: #{tpu_custom_call.1} parent=1 // pred_check
      _
    $region59: #{tpu_custom_call.1} parent=1 // pred_check_branch
      %1739 = sbr.rel (0) target = $region61
    $region60: #{tpu_custom_call.1} parent=1 // pred_region
      %s1741 = ssub.s32 64, 64
      %1742 = vsyncadd [#allocation7], %s1741
      %s1744 = sshll.u32 [#allocation17], 4
      %s1745 = int_to_ptr.vmem [resolvable:$true] %s1744
      %1747 = dma.vmem_to_hbm [thread:$0]  %s1745, 64, %s8, [#allocation7]
    $region61: #{tpu_custom_call.1} parent=1 // pred_fallthru
      _
    // Predicated region
    $region62: #{tpu_custom_call.1} parent=1 // pred_check
      _
    $region63: #{tpu_custom_call.1} parent=1 // pred_check_branch
      %1749 = sbr.rel (0) target = $region65
    $region64: #{tpu_custom_call.1} parent=1 // pred_region
      %1750 = dma.done [#allocation7], 64
    $region65: #{tpu_custom_call.1} parent=1 // pred_fallthru
      _
    %1751 = vsyncpa [#allocation6], 1
    %1752 = vsyncpa [#allocation9], 1
    %1753 = vsyncpa [#allocation12], 1
    %1754 = vsyncpa [#allocation15], 1
    %1755 = vsyncpa [#allocation7], 1

</llo_original>
